<compile_context>
chip_gen: v7x
topology: tpu7x:2x2x1
jax: 0.10.0
libtpu: 0.0.40
codegen_flags: <defaults>
</compile_context>

<pallas_src>
import jax
import jax.numpy as jnp
from jax import lax
from jax.experimental import pallas as pl
from jax.experimental.pallas import tpu as pltpu

_BN_EPS = 1e-5


# ----------------------------------------------------------------------------
# Fused Pallas kernels (NHWC inside; channels on the 128-lane axis)
# ----------------------------------------------------------------------------
def _fused_s1_kernel(x_ref, w1_ref, b1_ref, wdw_ref, w2sh_ref, esh_ref,
                     bsh_ref, o_ref, pad_ref):
    """stride==1 block: pw1+BN+ReLU -> dw3x3+BN -> pw2+BN+ReLU, with the x1
    passthrough and channel_shuffle folded into the final (interleaved) store.

    x_ref   : (1, H, W, Cin)   NHWC input image, Cin = 2*bf
    w1_ref  : (Cin, bf)        pw1 weight (x2-selection + BN scale folded in)
    b1_ref  : (1, bf)          pw1 folded BN shift
    wdw_ref : (9, bf)          depthwise taps, index = kh*3 + kw
    w2sh_ref: (bf, Cout)       pw2 weight (BN folded), columns scattered to odd slots
    esh_ref : (Cin, Cout)      x1 passthrough scattered to even slots
    bsh_ref : (1, Cout)        pw2 bias at odd slots, 0 at even slots
    o_ref   : (1, H*W, Cout)   shuffled output
    pad_ref : (H+2, W+2, bf)   VMEM scratch (zero-padded dw input)
    """
    _, H, W, Cin = x_ref.shape
    bf = w1_ref.shape[1]

    x = x_ref[0]                                   # (H, W, Cin)
    xf = x.reshape(H * W, Cin)

    # branch2 stage 1: 1x1 conv (+ folded BN) + ReLU, on the MXU
    y = jnp.dot(xf, w1_ref[...], preferred_element_type=jnp.float32)
    y = jnp.maximum(y + b1_ref[...], 0.0)          # (H*W, bf)

    # depthwise 3x3 stride 1; halo built entirely in VMEM
    pad_ref[...] = jnp.zeros_like(pad_ref)
    pad_ref[1:H + 1, 1:W + 1, :] = y.reshape(H, W, bf)
    yp = pad_ref[...]                              # (H+2, W+2, bf)
    wt = wdw_ref[...]                              # (9, bf)
    acc = jnp.zeros((H, W, bf), jnp.float32)
    for dh in range(3):
        for dw in range(3):
            acc += yp[dh:dh + H, dw:dw + W, :] * wt[dh * 3 + dw]
    z = acc.reshape(H * W, bf)

    # branch2 stage 2 (BN + shuffle folded into the scattered weight) + x1 passthrough
    b2 = jnp.maximum(
        jnp.dot(z, w2sh_ref[...], preferred_element_type=jnp.float32)
        + bsh_ref[...], 0.0)                       # odd cols = branch2, even cols = 0
    x1 = jnp.dot(xf, esh_ref[...],
                 preferred_element_type=jnp.float32)  # even cols = x1, odd cols = 0
    o_ref[0] = (x1 + b2).astype(o_ref.dtype)


def _fused_s2_kernel(x_ref, w1_ref, b1_ref, wdw_ref, wsh_ref, bsh_ref,
                     sel_ref, o_ref, pad_ref):
    """stride>1 block: both branches + concat + channel_shuffle in one kernel.

    branch1: dw3x3(stride) on x        -> 1x1 conv (BN folded) -> ReLU -> even slots
    branch2: 1x1 conv (+BN+ReLU) on x  -> dw3x3(stride)        -> 1x1 conv -> ReLU -> odd slots

    Both depthwise convolutions are computed densely (stride 1) on a single merged
    channel axis [x | y]; the stride subsample is one exact one-hot selection matmul.

    x_ref  : (1, H, W, Cin)
    w1_ref : (Cin, bf)         branch2 pw1 weight (BN folded)
    b1_ref : (1, bf)           branch2 pw1 folded BN shift
    wdw_ref: (9, Cin+bf)       merged dw taps: [:Cin] branch1 (on x), [Cin:] branch2 (on y)
    wsh_ref: (Cin+bf, Cout)    merged final 1x1 weights, BN + shuffle scatter folded in
    bsh_ref: (1, Cout)         merged final biases (even = branch1, odd = branch2)
    sel_ref: (Ho*Wo, H*W)      one-hot pixel selection implementing the stride
    o_ref  : (1, Ho*Wo, Cout)
    pad_ref: (H+2, W+2, Cin+bf) VMEM scratch (zero-padded merged dw input)
    """
    _, H, W, Cin = x_ref.shape
    bf = w1_ref.shape[1]
    Ct = Cin + bf

    x = x_ref[0]                                   # (H, W, Cin)
    xf = x.reshape(H * W, Cin)

    # branch2 stage 1: 1x1 conv (+BN) + ReLU at full resolution (MXU)
    y = jnp.dot(xf, w1_ref[...], preferred_element_type=jnp.float32)
    y = jnp.maximum(y + b1_ref[...], 0.0)          # (H*W, bf)

    # merged zero-padded dw input [x | y] built entirely in VMEM (no HBM pad pass)
    pad_ref[...] = jnp.zeros_like(pad_ref)
    pad_ref[1:H + 1, 1:W + 1, :] = jnp.concatenate(
        [x, y.reshape(H, W, bf)], axis=-1)
    yp = pad_ref[...]                              # (H+2, W+2, Ct)
    wt = wdw_ref[...]                              # (9, Ct)

    # dense 3x3 depthwise for BOTH branches at once (9 vector FMAs total)
    acc = jnp.zeros((H, W, Ct), jnp.float32)
    for dh in range(3):
        for dw in range(3):
            acc += yp[dh:dh + H, dw:dw + W, :] * wt[dh * 3 + dw]

    # stride subsample: exact one-hot pixel-selection matmul (MXU), fully vectorized
    z = jnp.dot(sel_ref[...], acc.reshape(H * W, Ct),
                preferred_element_type=jnp.float32)          # (Ho*Wo, Ct)

    # merged final 1x1 convs: BN + concat + channel_shuffle folded into wsh columns
    pre = jnp.dot(z, wsh_ref[...], preferred_element_type=jnp.float32) + bsh_ref[...]
    o_ref[0] = jnp.maximum(pre, 0.0).astype(o_ref.dtype)


# ----------------------------------------------------------------------------
# BN folding + shuffle folding (wrapper-side, tiny arrays, one-time)
# ----------------------------------------------------------------------------
def _fold_bn(bn):
    gamma, beta, mean, var = bn
    scale = gamma / jnp.sqrt(var + _BN_EPS)
    shift = beta - mean * scale
    return scale.astype(jnp.float32), shift.astype(jnp.float32)


def _dw_taps(w_torch):
    # torch depthwise weight (C, 1, 3, 3) -> (9, C), tap index = kh*3 + kw
    c = w_torch.shape[0]
    return jnp.transpose(w_torch[:, 0], (1, 2, 0)).reshape(9, c).astype(jnp.float32)


def _prepare_folded_params(P, inp, stride):
    bf = P["b2_w1"].shape[0]
    cout = 2 * bf

    # branch2 stage 1: conv1x1 -> BN -> ReLU  (BN scale folded into the weight columns)
    s1, t1 = _fold_bn(P["b2_bn1"])
    a1 = jnp.transpose(P["b2_w1"]).astype(jnp.float32) * s1[None, :]
    if stride == 1:
        # branch2 only sees x2 == channels [bf:2bf); fold the chunk() into the weight rows
        w1 = jnp.zeros((inp, bf), jnp.float32).at[bf:, :].set(a1)
    else:
        w1 = a1                                                   # (inp, bf)
    b1 = t1.reshape(1, bf)

    # branch2: dw -> BN -> conv1x1 -> BN -> ReLU   (dw BN folded into pw2 weight/bias)
    sd2, td2 = _fold_bn(P["b2_bn_dw"])
    s2, t2 = _fold_bn(P["b2_bn2"])
    a2 = jnp.transpose(P["b2_w2"]).astype(jnp.float32) * s2[None, :]
    w2e = sd2[:, None] * a2                                       # (bf, bf)
    b2e = td2 @ a2 + t2                                           # (bf,)
    # channel_shuffle(groups=2): branch2 channels land on odd output slots
    w2sh = jnp.zeros((bf, cout), jnp.float32).at[:, 1::2].set(w2e)

    fp = {"w1": w1, "b1": b1, "bf": bf}

    if stride == 1:
        fp["wdw"] = _dw_taps(P["b2_wdw"])
        fp["w2sh"] = w2sh
        # x1 passthrough scattered onto even output slots (no BN / ReLU on it)
        fp["esh"] = jnp.zeros((inp, cout), jnp.float32).at[:bf, 0::2].set(jnp.eye(bf))
        fp["bsh"] = jnp.zeros((cout,), jnp.float32).at[1::2].set(b2e).reshape(1, cout)
    else:
        # branch1: dw -> BN -> conv1x1 -> BN -> ReLU, scattered onto even output slots
        sd1, td1 = _fold_bn(P["b1_bn_dw"])
        sb1, tb1 = _fold_bn(P["b1_bn1"])
        bb1 = jnp.transpose(P["b1_w1"]).astype(jnp.float32) * sb1[None, :]  # (inp, bf)
        w1b = sd1[:, None] * bb1
        b1b = td1 @ bb1 + tb1
        # merged dw tap table: channels [0:inp] = branch1 (on x), [inp:] = branch2 (on y)
        fp["wdw"] = jnp.concatenate(
            [_dw_taps(P["b1_wdw"]), _dw_taps(P["b2_wdw"])], axis=1)   # (9, inp+bf)
        wsh = jnp.zeros((inp + bf, cout), jnp.float32)
        wsh = wsh.at[:inp, 0::2].set(w1b)          # branch1 -> even output slots
        wsh = wsh.at[inp:, 1::2].set(w2e)          # branch2 -> odd output slots
        fp["wsh"] = wsh
        fp["bsh"] = (jnp.zeros((cout,), jnp.float32)
                     .at[0::2].set(b1b).at[1::2].set(b2e)).reshape(1, cout)
    return fp


# ----------------------------------------------------------------------------
# Public wrapper: NCHW in / NCHW out, one fused pallas_call per block
# ----------------------------------------------------------------------------
def inverted_residual_pallas(x_nchw, P, stride):
    assert 1 <= stride <= 3
    N, Cin, H, W = x_nchw.shape
    Ho = (H - 1) // stride + 1
    Wo = (W - 1) // stride + 1

    x = jnp.transpose(x_nchw, (0, 2, 3, 1)).astype(jnp.float32)   # NCHW -> NHWC
    fp = _prepare_folded_params(P, Cin, stride)
    bf = fp["bf"]
    cout = 2 * bf

    cp = pltpu.CompilerParams(
        dimension_semantics=("parallel",),          # pipeline / split batch across TCs
        vmem_limit_bytes=64 * 1024 * 1024,
    )
    full2 = lambda n: (0, 0)
    x_spec = pl.BlockSpec((1, H, W, Cin), lambda n: (n, 0, 0, 0))
    out_spec = pl.BlockSpec((1, Ho * Wo, cout), lambda n: (n, 0, 0))
    out_shape = jax.ShapeDtypeStruct((N, Ho * Wo, cout), jnp.float32)

    if stride == 1:
        out2d = pl.pallas_call(
            _fused_s1_kernel,
            out_shape=out_shape,
            grid=(N,),
            in_specs=[
                x_spec,
                pl.BlockSpec((Cin, bf), full2),
                pl.BlockSpec((1, bf), full2),
                pl.BlockSpec((9, bf), full2),
                pl.BlockSpec((bf, cout), full2),
                pl.BlockSpec((Cin, cout), full2),
                pl.BlockSpec((1, cout), full2),
            ],
            out_specs=out_spec,
            scratch_shapes=[pltpu.VMEM((H + 2, W + 2, bf), jnp.float32)],
            compiler_params=cp,
        )(x, fp["w1"], fp["b1"], fp["wdw"], fp["w2sh"], fp["esh"], fp["bsh"])
    else:
        Ct = Cin + bf
        # one-hot pixel selection: output pixel (ho, wo) <- dense pixel (s*ho, s*wo)
        rows = jnp.arange(Ho * Wo)
        src = (stride * (rows // Wo)) * W + stride * (rows % Wo)
        sel = jnp.zeros((Ho * Wo, H * W), jnp.float32).at[rows, src].set(1.0)
        out2d = pl.pallas_call(
            _fused_s2_kernel,
            out_shape=out_shape,
            grid=(N,),
            in_specs=[
                x_spec,
                pl.BlockSpec((Cin, bf), full2),
                pl.BlockSpec((1, bf), full2),
                pl.BlockSpec((9, Ct), full2),
                pl.BlockSpec((Ct, cout), full2),
                pl.BlockSpec((1, cout), full2),
                pl.BlockSpec((Ho * Wo, H * W), full2),
            ],
            out_specs=out_spec,
            scratch_shapes=[pltpu.VMEM((H + 2, W + 2, Ct), jnp.float32)],
            compiler_params=cp,
        )(x, fp["w1"], fp["b1"], fp["wdw"], fp["wsh"], fp["bsh"], sel)

    out = out2d.reshape(N, Ho, Wo, cout)
    return jnp.transpose(out, (0, 3, 1, 2))          # NHWC -> NCHW


# ----------------------------------------------------------------------------
# Deterministic synthetic parameters
# ----------------------------------------------------------------------------
def _make_bn(key, c):
    k1, k2, k3, k4 = jax.random.split(key, 4)
    gamma = jax.random.uniform(k1, (c,), minval=0.5, maxval=1.5)
    beta = jax.random.normal(k2, (c,)) * 0.1
    mean = jax.random.normal(k3, (c,)) * 0.1
    var = jax.random.uniform(k4, (c,), minval=0.5, maxval=1.5)
    return gamma, beta, mean, var


def make_params(key, inp, oup, stride):
    bf = oup // 2
    ks = jax.random.split(key, 10)
    cin2 = inp if stride > 1 else bf
    P = {
        "b2_w1": jax.random.normal(ks[0], (bf, cin2)) * 0.3,      # torch (Cout,Cin)
        "b2_bn1": _make_bn(ks[1], bf),
        "b2_wdw": jax.random.normal(ks[2], (bf, 1, 3, 3)) * 0.3,  # torch (C,1,3,3)
        "b2_bn_dw": _make_bn(ks[3], bf),
        "b2_w2": jax.random.normal(ks[4], (bf, bf)) * 0.3,
        "b2_bn2": _make_bn(ks[5], bf),
    }
    if stride > 1:
        P["b1_wdw"] = jax.random.normal(ks[6], (inp, 1, 3, 3)) * 0.3
        P["b1_bn_dw"] = _make_bn(ks[7], inp)
        P["b1_w1"] = jax.random.normal(ks[8], (bf, inp)) * 0.3
        P["b1_bn1"] = _make_bn(ks[9], bf)
    return P


# ----------------------------------------------------------------------------
# Pure-JAX reference (mirrors the PyTorch module exactly, NCHW)
# ----------------------------------------------------------------------------
def ref_forward(x_nchw, P, stride):
    def bn(x, p):
        g, b, m, v = p
        rs = lambda a: a[None, :, None, None]
        return (x - rs(m)) / jnp.sqrt(rs(v) + _BN_EPS) * rs(g) + rs(b)

    def pw(x, w):
        return lax.conv_general_dilated(
            x, w[:, :, None, None], (1, 1), "VALID",
            dimension_numbers=("NCHW", "OIHW", "NCHW"))

    def dw(x, w, s):
        return lax.conv_general_dilated(
            x, w, (s, s), ((1, 1), (1, 1)),
            dimension_numbers=("NCHW", "OIHW", "NCHW"),
            feature_group_count=x.shape[1])

    def branch2(z):
        y = jax.nn.relu(bn(pw(z, P["b2_w1"]), P["b2_bn1"]))
        y = bn(dw(y, P["b2_wdw"], stride), P["b2_bn_dw"])
        y = jax.nn.relu(bn(pw(y, P["b2_w2"]), P["b2_bn2"]))
        return y

    if stride == 1:
        x1, x2 = jnp.split(x_nchw, 2, axis=1)
        out = jnp.concatenate([x1, branch2(x2)], axis=1)
    else:
        y = bn(dw(x_nchw, P["b1_wdw"], stride), P["b1_bn_dw"])
        b1 = jax.nn.relu(bn(pw(y, P["b1_w1"]), P["b1_bn1"]))
        out = jnp.concatenate([b1, branch2(x_nchw)], axis=1)

    N, C, H, W = out.shape
    out = out.reshape(N, 2, C // 2, H, W).transpose(0, 2, 1, 3, 4).reshape(N, C, H, W)
    return out


# ----------------------------------------------------------------------------
if __name__ == "__main__":
    key = jax.random.PRNGKey(0)
    kx, kp1, kp2 = jax.random.split(key, 3)
    x = jax.random.normal(kx, (2, 4, 16, 16), dtype=jnp.float32)

    fwd = jax.jit(inverted_residual_pallas, static_argnums=2)

    # stride=1 block: inp=4, oup=4 (branch_features=2)
    P1 = make_params(kp1, inp=4, oup=4, stride=1)
    out1 = jax.block_until_ready(fwd(x, P1, 1))
    ref1 = ref_forward(x, P1, 1)
    assert out1.shape == (2, 4, 16, 16)
    assert jnp.allclose(out1, ref1, atol=2e-2, rtol=2e-2), "stride=1 mismatch"

    # stride=2 block: inp=4, oup=8 (branch_features=4), spatial 16 -> 8
    P2 = make_params(kp2, inp=4, oup=8, stride=2)
    out2 = jax.block_until_ready(fwd(x, P2, 2))
    ref2 = ref_forward(x, P2, 2)
    assert out2.shape == (2, 8, 8, 8)
    assert jnp.allclose(out2, ref2, atol=2e-2, rtol=2e-2), "stride=2 mismatch"

    print("KERNEL_OK")
</pallas_src>

<mosaic_0001>
module attributes {stable_mosaic.version = 11 : i64} {
  func.func @_fused_s1_kernel(%arg0: i32, %arg1: memref<1x16x16x4xf32, #tpu.memory_space<vmem>>, %arg2: memref<4x2xf32, #tpu.memory_space<vmem>>, %arg3: memref<1x2xf32, #tpu.memory_space<vmem>>, %arg4: memref<9x2xf32, #tpu.memory_space<vmem>>, %arg5: memref<2x4xf32, #tpu.memory_space<vmem>>, %arg6: memref<4x4xf32, #tpu.memory_space<vmem>>, %arg7: memref<1x4xf32, #tpu.memory_space<vmem>>, %arg8: memref<1x256x4xf32, #tpu.memory_space<vmem>>, %arg9: memref<18x18x2xf32, #tpu.memory_space<vmem>>) attributes {dimension_semantics = [#tpu.dimension_semantics<parallel>], iteration_bounds = array<i64: 2>, scalar_prefetch = 0 : i64, scratch_operands = 1 : i64, tpu.core_type = #tpu.core_type<tc>, window_params = [{transform_indices = @transform_0, window_bounds = array<i64: 1, 16, 16, 4>}, {pipeline_mode = #tpu.pipeline_mode<synchronous>, transform_indices = @transform_1, window_bounds = array<i64: 4, 2>}, {pipeline_mode = #tpu.pipeline_mode<synchronous>, transform_indices = @transform_2, window_bounds = array<i64: 1, 2>}, {pipeline_mode = #tpu.pipeline_mode<synchronous>, transform_indices = @transform_3, window_bounds = array<i64: 9, 2>}, {pipeline_mode = #tpu.pipeline_mode<synchronous>, transform_indices = @transform_4, window_bounds = array<i64: 2, 4>}, {pipeline_mode = #tpu.pipeline_mode<synchronous>, transform_indices = @transform_5, window_bounds = array<i64: 4, 4>}, {pipeline_mode = #tpu.pipeline_mode<synchronous>, transform_indices = @transform_6, window_bounds = array<i64: 1, 4>}, {transform_indices = @transform_7, window_bounds = array<i64: 1, 256, 4>}]} {
    %c0 = arith.constant 0 : index
    %c0_0 = arith.constant 0 : index
    %c0_1 = arith.constant 0 : index
    %c0_2 = arith.constant 0 : index
    %0 = vector.load %arg1[%c0, %c0_0, %c0_1, %c0_2] : memref<1x16x16x4xf32, #tpu.memory_space<vmem>>, vector<1x16x16x4xf32>
    %1 = vector.shape_cast %0 : vector<1x16x16x4xf32> to vector<16x16x4xf32>
    %2 = vector.shape_cast %1 : vector<16x16x4xf32> to vector<256x4xf32>
    %c0_3 = arith.constant 0 : index
    %c0_4 = arith.constant 0 : index
    %3 = vector.load %arg2[%c0_3, %c0_4] : memref<4x2xf32, #tpu.memory_space<vmem>>, vector<4x2xf32>
    %cst = arith.constant dense<0.000000e+00> : vector<256x2xf32>
    %4 = tpu.matmul %2, %3, %cst {dimension_numbers = #tpu.dot_dimension_numbers<[1], [0], [0], [1], [0, 0, 1, 1], [], []>} : vector<256x4xf32>, vector<4x2xf32>, vector<256x2xf32> -> vector<256x2xf32>
    %c0_5 = arith.constant 0 : index
    %c0_6 = arith.constant 0 : index
    %5 = vector.load %arg3[%c0_5, %c0_6] : memref<1x2xf32, #tpu.memory_space<vmem>>, vector<1x2xf32>
    %6 = vector.broadcast %5 : vector<1x2xf32> to vector<256x2xf32>
    %7 = arith.addf %4, %6 : vector<256x2xf32>
    %cst_7 = arith.constant 0.000000e+00 : f32
    %8 = vector.broadcast %cst_7 : f32 to vector<256x2xf32>
    %9 = arith.maximumf %7, %8 : vector<256x2xf32>
    %cst_8 = arith.constant 0.000000e+00 : f32
    %10 = vector.broadcast %cst_8 : f32 to vector<18x18x2xf32>
    %c0_9 = arith.constant 0 : index
    %c0_10 = arith.constant 0 : index
    %c0_11 = arith.constant 0 : index
    %11 = vector.load %arg9[%c0_9, %c0_10, %c0_11] : memref<18x18x2xf32, #tpu.memory_space<vmem>>, vector<18x18x2xf32>
    tpu.vector_store %arg9[%c0_9, %c0_10, %c0_11], %10 {strides = array<i32>} : memref<18x18x2xf32, #tpu.memory_space<vmem>>, vector<18x18x2xf32>,
    %12 = vector.shape_cast %9 : vector<256x2xf32> to vector<16x16x2xf32>
    %c1 = arith.constant 1 : index
    %c1_12 = arith.constant 1 : index
    %c0_13 = arith.constant 0 : index
    %13 = vector.load %arg9[%c1, %c1_12, %c0_13] : memref<18x18x2xf32, #tpu.memory_space<vmem>>, vector<16x16x2xf32>
    tpu.vector_store %arg9[%c1, %c1_12, %c0_13], %12 {strides = array<i32>} : memref<18x18x2xf32, #tpu.memory_space<vmem>>, vector<16x16x2xf32>,
    %c0_14 = arith.constant 0 : index
    %c0_15 = arith.constant 0 : index
    %c0_16 = arith.constant 0 : index
    %14 = vector.load %arg9[%c0_14, %c0_15, %c0_16] : memref<18x18x2xf32, #tpu.memory_space<vmem>>, vector<18x18x2xf32>
    %c0_17 = arith.constant 0 : index
    %c0_18 = arith.constant 0 : index
    %15 = vector.load %arg4[%c0_17, %c0_18] : memref<9x2xf32, #tpu.memory_space<vmem>>, vector<9x2xf32>
    %cst_19 = arith.constant 0.000000e+00 : f32
    %16 = vector.broadcast %cst_19 : f32 to vector<16x16x2xf32>
    %17 = vector.extract_strided_slice %14 {offsets = [0, 0, 0], sizes = [16, 16, 2], strides = [1, 1, 1]} : vector<18x18x2xf32> to vector<16x16x2xf32>
    %18 = vector.extract_strided_slice %15 {offsets = [0, 0], sizes = [1, 2], strides = [1, 1]} : vector<9x2xf32> to vector<1x2xf32>
    %19 = vector.shape_cast %18 : vector<1x2xf32> to vector<2xf32>
    %20 = vector.shape_cast %19 : vector<2xf32> to vector<1x1x2xf32>
    %21 = vector.broadcast %20 : vector<1x1x2xf32> to vector<16x16x2xf32>
    %22 = arith.mulf %17, %21 : vector<16x16x2xf32>
    %23 = arith.addf %16, %22 : vector<16x16x2xf32>
    %24 = vector.extract_strided_slice %14 {offsets = [0, 1, 0], sizes = [16, 16, 2], strides = [1, 1, 1]} : vector<18x18x2xf32> to vector<16x16x2xf32>
    %25 = vector.extract_strided_slice %15 {offsets = [1, 0], sizes = [1, 2], strides = [1, 1]} : vector<9x2xf32> to vector<1x2xf32>
    %26 = vector.shape_cast %25 : vector<1x2xf32> to vector<2xf32>
    %27 = vector.shape_cast %26 : vector<2xf32> to vector<1x1x2xf32>
    %28 = vector.broadcast %27 : vector<1x1x2xf32> to vector<16x16x2xf32>
    %29 = arith.mulf %24, %28 : vector<16x16x2xf32>
    %30 = arith.addf %23, %29 : vector<16x16x2xf32>
    %31 = vector.extract_strided_slice %14 {offsets = [0, 2, 0], sizes = [16, 16, 2], strides = [1, 1, 1]} : vector<18x18x2xf32> to vector<16x16x2xf32>
    %32 = vector.extract_strided_slice %15 {offsets = [2, 0], sizes = [1, 2], strides = [1, 1]} : vector<9x2xf32> to vector<1x2xf32>
    %33 = vector.shape_cast %32 : vector<1x2xf32> to vector<2xf32>
    %34 = vector.shape_cast %33 : vector<2xf32> to vector<1x1x2xf32>
    %35 = vector.broadcast %34 : vector<1x1x2xf32> to vector<16x16x2xf32>
    %36 = arith.mulf %31, %35 : vector<16x16x2xf32>
    %37 = arith.addf %30, %36 : vector<16x16x2xf32>
    %38 = vector.extract_strided_slice %14 {offsets = [1, 0, 0], sizes = [16, 16, 2], strides = [1, 1, 1]} : vector<18x18x2xf32> to vector<16x16x2xf32>
    %39 = vector.extract_strided_slice %15 {offsets = [3, 0], sizes = [1, 2], strides = [1, 1]} : vector<9x2xf32> to vector<1x2xf32>
    %40 = vector.shape_cast %39 : vector<1x2xf32> to vector<2xf32>
    %41 = vector.shape_cast %40 : vector<2xf32> to vector<1x1x2xf32>
    %42 = vector.broadcast %41 : vector<1x1x2xf32> to vector<16x16x2xf32>
    %43 = arith.mulf %38, %42 : vector<16x16x2xf32>
    %44 = arith.addf %37, %43 : vector<16x16x2xf32>
    %45 = vector.extract_strided_slice %14 {offsets = [1, 1, 0], sizes = [16, 16, 2], strides = [1, 1, 1]} : vector<18x18x2xf32> to vector<16x16x2xf32>
    %46 = vector.extract_strided_slice %15 {offsets = [4, 0], sizes = [1, 2], strides = [1, 1]} : vector<9x2xf32> to vector<1x2xf32>
    %47 = vector.shape_cast %46 : vector<1x2xf32> to vector<2xf32>
    %48 = vector.shape_cast %47 : vector<2xf32> to vector<1x1x2xf32>
    %49 = vector.broadcast %48 : vector<1x1x2xf32> to vector<16x16x2xf32>
    %50 = arith.mulf %45, %49 : vector<16x16x2xf32>
    %51 = arith.addf %44, %50 : vector<16x16x2xf32>
    %52 = vector.extract_strided_slice %14 {offsets = [1, 2, 0], sizes = [16, 16, 2], strides = [1, 1, 1]} : vector<18x18x2xf32> to vector<16x16x2xf32>
    %53 = vector.extract_strided_slice %15 {offsets = [5, 0], sizes = [1, 2], strides = [1, 1]} : vector<9x2xf32> to vector<1x2xf32>
    %54 = vector.shape_cast %53 : vector<1x2xf32> to vector<2xf32>
    %55 = vector.shape_cast %54 : vector<2xf32> to vector<1x1x2xf32>
    %56 = vector.broadcast %55 : vector<1x1x2xf32> to vector<16x16x2xf32>
    %57 = arith.mulf %52, %56 : vector<16x16x2xf32>
    %58 = arith.addf %51, %57 : vector<16x16x2xf32>
    %59 = vector.extract_strided_slice %14 {offsets = [2, 0, 0], sizes = [16, 16, 2], strides = [1, 1, 1]} : vector<18x18x2xf32> to vector<16x16x2xf32>
    %60 = vector.extract_strided_slice %15 {offsets = [6, 0], sizes = [1, 2], strides = [1, 1]} : vector<9x2xf32> to vector<1x2xf32>
    %61 = vector.shape_cast %60 : vector<1x2xf32> to vector<2xf32>
    %62 = vector.shape_cast %61 : vector<2xf32> to vector<1x1x2xf32>
    %63 = vector.broadcast %62 : vector<1x1x2xf32> to vector<16x16x2xf32>
    %64 = arith.mulf %59, %63 : vector<16x16x2xf32>
    %65 = arith.addf %58, %64 : vector<16x16x2xf32>
    %66 = vector.extract_strided_slice %14 {offsets = [2, 1, 0], sizes = [16, 16, 2], strides = [1, 1, 1]} : vector<18x18x2xf32> to vector<16x16x2xf32>
    %67 = vector.extract_strided_slice %15 {offsets = [7, 0], sizes = [1, 2], strides = [1, 1]} : vector<9x2xf32> to vector<1x2xf32>
    %68 = vector.shape_cast %67 : vector<1x2xf32> to vector<2xf32>
    %69 = vector.shape_cast %68 : vector<2xf32> to vector<1x1x2xf32>
    %70 = vector.broadcast %69 : vector<1x1x2xf32> to vector<16x16x2xf32>
    %71 = arith.mulf %66, %70 : vector<16x16x2xf32>
    %72 = arith.addf %65, %71 : vector<16x16x2xf32>
    %73 = vector.extract_strided_slice %14 {offsets = [2, 2, 0], sizes = [16, 16, 2], strides = [1, 1, 1]} : vector<18x18x2xf32> to vector<16x16x2xf32>
    %74 = vector.extract_strided_slice %15 {offsets = [8, 0], sizes = [1, 2], strides = [1, 1]} : vector<9x2xf32> to vector<1x2xf32>
    %75 = vector.shape_cast %74 : vector<1x2xf32> to vector<2xf32>
    %76 = vector.shape_cast %75 : vector<2xf32> to vector<1x1x2xf32>
    %77 = vector.broadcast %76 : vector<1x1x2xf32> to vector<16x16x2xf32>
    %78 = arith.mulf %73, %77 : vector<16x16x2xf32>
    %79 = arith.addf %72, %78 : vector<16x16x2xf32>
    %80 = vector.shape_cast %79 : vector<16x16x2xf32> to vector<256x2xf32>
    %c0_20 = arith.constant 0 : index
    %c0_21 = arith.constant 0 : index
    %81 = vector.load %arg5[%c0_20, %c0_21] : memref<2x4xf32, #tpu.memory_space<vmem>>, vector<2x4xf32>
    %cst_22 = arith.constant dense<0.000000e+00> : vector<256x4xf32>
    %82 = tpu.matmul %80, %81, %cst_22 {dimension_numbers = #tpu.dot_dimension_numbers<[1], [0], [0], [1], [0, 0, 1, 1], [], []>} : vector<256x2xf32>, vector<2x4xf32>, vector<256x4xf32> -> vector<256x4xf32>
    %c0_23 = arith.constant 0 : index
    %c0_24 = arith.constant 0 : index
    %83 = vector.load %arg7[%c0_23, %c0_24] : memref<1x4xf32, #tpu.memory_space<vmem>>, vector<1x4xf32>
    %84 = vector.broadcast %83 : vector<1x4xf32> to vector<256x4xf32>
    %85 = arith.addf %82, %84 : vector<256x4xf32>
    %cst_25 = arith.constant 0.000000e+00 : f32
    %86 = vector.broadcast %cst_25 : f32 to vector<256x4xf32>
    %87 = arith.maximumf %85, %86 : vector<256x4xf32>
    %c0_26 = arith.constant 0 : index
    %c0_27 = arith.constant 0 : index
    %88 = vector.load %arg6[%c0_26, %c0_27] : memref<4x4xf32, #tpu.memory_space<vmem>>, vector<4x4xf32>
    %cst_28 = arith.constant dense<0.000000e+00> : vector<256x4xf32>
    %89 = tpu.matmul %2, %88, %cst_28 {dimension_numbers = #tpu.dot_dimension_numbers<[1], [0], [0], [1], [0, 0, 1, 1], [], []>} : vector<256x4xf32>, vector<4x4xf32>, vector<256x4xf32> -> vector<256x4xf32>
    %90 = arith.addf %89, %87 : vector<256x4xf32>
    %c0_29 = arith.constant 0 : index
    %c0_30 = arith.constant 0 : index
    %c0_31 = arith.constant 0 : index
    %91 = vector.load %arg8[%c0_29, %c0_30, %c0_31] : memref<1x256x4xf32, #tpu.memory_space<vmem>>, vector<1x256x4xf32>
    %92 = vector.shape_cast %91 : vector<1x256x4xf32> to vector<256x4xf32>
    %93 = vector.shape_cast %90 : vector<256x4xf32> to vector<1x256x4xf32>
    tpu.vector_store %arg8[%c0_29, %c0_30, %c0_31], %93 {strides = array<i32>} : memref<1x256x4xf32, #tpu.memory_space<vmem>>, vector<1x256x4xf32>,
    return
  }
  func.func @transform_0(%arg0: i32) -> (i32, i32, i32, i32) {
    %c0_i32 = arith.constant 0 : i32
    %c0_i32_0 = arith.constant 0 : i32
    %c0_i32_1 = arith.constant 0 : i32
    %c0_i32_2 = arith.constant 0 : i32
    return %arg0, %c0_i32, %c0_i32_0, %c0_i32_1 : i32, i32, i32, i32
  }
  func.func @transform_1(%arg0: i32) -> (i32, i32) {
    %c0_i32 = arith.constant 0 : i32
    %c0_i32_0 = arith.constant 0 : i32
    %c0_i32_1 = arith.constant 0 : i32
    return %c0_i32, %c0_i32_0 : i32, i32
  }
  func.func @transform_2(%arg0: i32) -> (i32, i32) {
    %c0_i32 = arith.constant 0 : i32
    %c0_i32_0 = arith.constant 0 : i32
    %c0_i32_1 = arith.constant 0 : i32
    return %c0_i32, %c0_i32_0 : i32, i32
  }
  func.func @transform_3(%arg0: i32) -> (i32, i32) {
    %c0_i32 = arith.constant 0 : i32
    %c0_i32_0 = arith.constant 0 : i32
    %c0_i32_1 = arith.constant 0 : i32
    return %c0_i32, %c0_i32_0 : i32, i32
  }
  func.func @transform_4(%arg0: i32) -> (i32, i32) {
    %c0_i32 = arith.constant 0 : i32
    %c0_i32_0 = arith.constant 0 : i32
    %c0_i32_1 = arith.constant 0 : i32
    return %c0_i32, %c0_i32_0 : i32, i32
  }
  func.func @transform_5(%arg0: i32) -> (i32, i32) {
    %c0_i32 = arith.constant 0 : i32
    %c0_i32_0 = arith.constant 0 : i32
    %c0_i32_1 = arith.constant 0 : i32
    return %c0_i32, %c0_i32_0 : i32, i32
  }
  func.func @transform_6(%arg0: i32) -> (i32, i32) {
    %c0_i32 = arith.constant 0 : i32
    %c0_i32_0 = arith.constant 0 : i32
    %c0_i32_1 = arith.constant 0 : i32
    return %c0_i32, %c0_i32_0 : i32, i32
  }
  func.func @transform_7(%arg0: i32) -> (i32, i32, i32) {
    %c0_i32 = arith.constant 0 : i32
    %c0_i32_0 = arith.constant 0 : i32
    %c0_i32_1 = arith.constant 0 : i32
    return %arg0, %c0_i32, %c0_i32_0 : i32, i32, i32
  }
}

</mosaic_0001>

<llo_original>
// kernel: inverted_residual_pallas.1
$region0: #{inverted_residual_pallas.1}
  #allocation0 [shape = 'u32[]', space=smem, size = 0x4, offset = 0x4, fixed_abs, tag = 'smem constant byte address 0x4 - core index']
  #allocation1 [shape = 'u32[144,128]{1,0:T(1,128)}', space=vmem, size = 0x12000, scoped, tag = 'internal scratch']
  #allocation2 [shape = 'f32[18,18,2]{2,1,0:T(8,128)}', space=vmem, size = 0x36000, scoped, tag = 'scratch operand']
  %s0 = inlined_call_operand.hbm [shape: f32[2,16,16,4], index: 0, kind: input, shape index: {}]
  %s1 = inlined_call_operand.hbm [shape: f32[4,2], index: 1, kind: input, shape index: {}]
  %s2 = inlined_call_operand.hbm [shape: f32[1,2], index: 2, kind: input, shape index: {}]
  %s3 = inlined_call_operand.hbm [shape: f32[9,2], index: 3, kind: input, shape index: {}]
  %s4 = inlined_call_operand.hbm [shape: f32[2,4], index: 4, kind: input, shape index: {}]
  %s5 = inlined_call_operand.hbm [shape: f32[4,4], index: 5, kind: input, shape index: {}]
  %s6 = inlined_call_operand.hbm [shape: f32[1,4], index: 6, kind: input, shape index: {}]
  %s7 = inlined_call_operand.hbm [shape: f32[2,256,4], index: 7, kind: output, shape index: {}]
  %s8 = sld [smem:[#allocation0]]
  $region89: #{inverted_residual_pallas.1} parent=0
    _
  %s10 = ssub.s32 1, %s8
  %s11 = scalar_select 0, %s10, %s8
  $region1: #{inverted_residual_pallas.1} parent=0
    #allocation3 [shape = 'u8[262144]{0}', space=vmem, size = 0x40000, scoped, tag = 'input window, operand 0']
    #allocation4 [shape = 's32[2]{0}', space=sflag, size = 0x8, scoped, tag = 'scoped memory for inverted_residual_pallas.1']
    #allocation5 [shape = 's32[2]{0}', space=sflag, size = 0x8, scoped, tag = 'scoped memory for inverted_residual_pallas.1']
    #allocation6 [shape = 'u8[2048]{0}', space=vmem, size = 0x800, scoped, tag = 'input window, operand 1, single buffered']
    #allocation7 [shape = 's32[1]{0}', space=sflag, size = 0x4, scoped, tag = 'scoped memory for inverted_residual_pallas.1']
    #allocation8 [shape = 'u8[512]{0}', space=vmem, size = 0x400, scoped, tag = 'input window, operand 2, single buffered']
    #allocation9 [shape = 'u8[8192]{0}', space=vmem, size = 0x2000, scoped, tag = 'input window, operand 3, single buffered']
    #allocation10 [shape = 's32[1]{0}', space=sflag, size = 0x4, scoped, tag = 'scoped memory for inverted_residual_pallas.1']
    #allocation11 [shape = 'u8[1024]{0}', space=vmem, size = 0x400, scoped, tag = 'input window, operand 4, single buffered']
    #allocation12 [shape = 'u8[2048]{0}', space=vmem, size = 0x800, scoped, tag = 'input window, operand 5, single buffered']
    #allocation13 [shape = 's32[1]{0}', space=sflag, size = 0x4, scoped, tag = 'scoped memory for inverted_residual_pallas.1']
    #allocation14 [shape = 'u8[512]{0}', space=vmem, size = 0x400, scoped, tag = 'input window, operand 6, single buffered']
    #allocation15 [shape = 'u8[262144]{0}', space=vmem, size = 0x40000, scoped, tag = 'output window, operand 0']
    %12 = vsyncpa [#allocation4], 0
    %s13 = scalar_lea.sflag [#allocation4], 1
    %14 = vsyncpa %s13, 0
    %15 = vsyncpa [#allocation7], 0
    %16 = vsyncpa [#allocation10], 0
    %17 = vsyncpa [#allocation13], 0
    %18 = vsyncpa [#allocation5], 0
    %s19 = scalar_lea.sflag [#allocation5], 1
    %20 = vsyncpa %s19, 0
    loop: start=0, step=1, limit=4
    $region2: #{inverted_residual_pallas.1} parent=1 // loop_pre_header
      _
    $region3: #{inverted_residual_pallas.1} parent=1 // loop_header
      %s22 = sphi 0, %s26
      %p23 = scmp.ge.s32.totalorder %s22, 4
      %s32 = sphi 0, %s34
      %s35 = sphi 0, %s32
      %s36 = sphi 0, %s35
      %s52 = sphi 0, %s36
      %s56 = sphi 0, %s56
      %s58 = sphi 0, %s56
      %s59 = sphi 0, %s58
      %s73 = sphi 0, %s59
      %s77 = sphi 0, %s77
      %s79 = sphi 0, %s77
      %s80 = sphi 0, %s79
      %s94 = sphi 0, %s80
      %s98 = sphi 0, %s98
      %s100 = sphi 0, %s98
      %s101 = sphi 0, %s100
      %s115 = sphi 0, %s101
      %s119 = sphi 0, %s119
      %s121 = sphi 0, %s119
      %s122 = sphi 0, %s121
      %s136 = sphi 0, %s122
      %s140 = sphi 0, %s140
      %s142 = sphi 0, %s140
      %s143 = sphi 0, %s142
      %s157 = sphi 0, %s143
      %s161 = sphi 0, %s161
      %s163 = sphi 0, %s161
      %s164 = sphi 0, %s163
      %s178 = sphi 0, %s164
      %s184 = sphi 0, %s186
      %s187 = sphi 0, %s184
      %s188 = sphi 0, %s187
      %s204 = sphi 0, %s188
    $region4: #{inverted_residual_pallas.1} parent=1 // loop_header_branch
      %25 = sbr.rel (%p23) target = $region8
    $region5: #{inverted_residual_pallas.1} parent=1 // loop_body
      %s27 = ssub.s32 %s22, 1
      %s28 = ssub.s32 %s22, 2
      %s29 = sadd.s32 %s22, 1
      %s30 = ssub.s32 %s22, %s29
      %p31 = scmp.eq.s32.totalorder %s30, 0
      %s33 = sadd.s32 %s32, 1
      %s34 = scalar_select %p31, %s32, %s33
      %p37 = pneg %p31
      %p38 = scmp.eq.s32.totalorder %s22, 1
      %p39 = por %p37, %p38
      %p40 = scmp.ne.s32.totalorder %s32, %s35
      %p41 = scmp.eq.s32.totalorder %s22, 0
      %p42 = por %p40, %p41
      %p43 = scmp.ne.s32.totalorder %s32, %s35
      %p44 = scmp.eq.s32.totalorder %s27, 1
      %p45 = por %p43, %p44
      %p46 = scmp.ne.s32.totalorder %s35, %s36
      %p47 = scmp.eq.s32.totalorder %s27, 0
      %p48 = por %p46, %p47
      %p49 = scmp.ne.s32.totalorder %s35, %s36
      %p50 = scmp.eq.s32.totalorder %s28, 1
      %p51 = por %p49, %p50
      %p53 = scmp.ne.s32.totalorder %s36, %s52
      %p54 = scmp.eq.s32.totalorder %s28, 0
      %p55 = por %p53, %p54
      %s57 = sadd.s32 %s56, 1
      %p60 = scmp.eq.s32.totalorder %s22, 1
      %p61 = scmp.ne.s32.totalorder %s56, %s58
      %p62 = scmp.eq.s32.totalorder %s22, 0
      %p63 = por %p61, %p62
      %p64 = scmp.ne.s32.totalorder %s56, %s58
      %p65 = scmp.eq.s32.totalorder %s27, 1
      %p66 = por %p64, %p65
      %p67 = scmp.ne.s32.totalorder %s58, %s59
      %p68 = scmp.eq.s32.totalorder %s27, 0
      %p69 = por %p67, %p68
      %p70 = scmp.ne.s32.totalorder %s58, %s59
      %p71 = scmp.eq.s32.totalorder %s28, 1
      %p72 = por %p70, %p71
      %p74 = scmp.ne.s32.totalorder %s59, %s73
      %p75 = scmp.eq.s32.totalorder %s28, 0
      %p76 = por %p74, %p75
      %s78 = sadd.s32 %s77, 1
      %p81 = scmp.eq.s32.totalorder %s22, 1
      %p82 = scmp.ne.s32.totalorder %s77, %s79
      %p83 = scmp.eq.s32.totalorder %s22, 0
      %p84 = por %p82, %p83
      %p85 = scmp.ne.s32.totalorder %s77, %s79
      %p86 = scmp.eq.s32.totalorder %s27, 1
      %p87 = por %p85, %p86
      %p88 = scmp.ne.s32.totalorder %s79, %s80
      %p89 = scmp.eq.s32.totalorder %s27, 0
      %p90 = por %p88, %p89
      %p91 = scmp.ne.s32.totalorder %s79, %s80
      %p92 = scmp.eq.s32.totalorder %s28, 1
      %p93 = por %p91, %p92
      %p95 = scmp.ne.s32.totalorder %s80, %s94
      %p96 = scmp.eq.s32.totalorder %s28, 0
      %p97 = por %p95, %p96
      %s99 = sadd.s32 %s98, 1
      %p102 = scmp.eq.s32.totalorder %s22, 1
      %p103 = scmp.ne.s32.totalorder %s98, %s100
      %p104 = scmp.eq.s32.totalorder %s22, 0
      %p105 = por %p103, %p104
      %p106 = scmp.ne.s32.totalorder %s98, %s100
      %p107 = scmp.eq.s32.totalorder %s27, 1
      %p108 = por %p106, %p107
      %p109 = scmp.ne.s32.totalorder %s100, %s101
      %p110 = scmp.eq.s32.totalorder %s27, 0
      %p111 = por %p109, %p110
      %p112 = scmp.ne.s32.totalorder %s100, %s101
      %p113 = scmp.eq.s32.totalorder %s28, 1
      %p114 = por %p112, %p113
      %p116 = scmp.ne.s32.totalorder %s101, %s115
      %p117 = scmp.eq.s32.totalorder %s28, 0
      %p118 = por %p116, %p117
      %s120 = sadd.s32 %s119, 1
      %p123 = scmp.eq.s32.totalorder %s22, 1
      %p124 = scmp.ne.s32.totalorder %s119, %s121
      %p125 = scmp.eq.s32.totalorder %s22, 0
      %p126 = por %p124, %p125
      %p127 = scmp.ne.s32.totalorder %s119, %s121
      %p128 = scmp.eq.s32.totalorder %s27, 1
      %p129 = por %p127, %p128
      %p130 = scmp.ne.s32.totalorder %s121, %s122
      %p131 = scmp.eq.s32.totalorder %s27, 0
      %p132 = por %p130, %p131
      %p133 = scmp.ne.s32.totalorder %s121, %s122
      %p134 = scmp.eq.s32.totalorder %s28, 1
      %p135 = por %p133, %p134
      %p137 = scmp.ne.s32.totalorder %s122, %s136
      %p138 = scmp.eq.s32.totalorder %s28, 0
      %p139 = por %p137, %p138
      %s141 = sadd.s32 %s140, 1
      %p144 = scmp.eq.s32.totalorder %s22, 1
      %p145 = scmp.ne.s32.totalorder %s140, %s142
      %p146 = scmp.eq.s32.totalorder %s22, 0
      %p147 = por %p145, %p146
      %p148 = scmp.ne.s32.totalorder %s140, %s142
      %p149 = scmp.eq.s32.totalorder %s27, 1
      %p150 = por %p148, %p149
      %p151 = scmp.ne.s32.totalorder %s142, %s143
      %p152 = scmp.eq.s32.totalorder %s27, 0
      %p153 = por %p151, %p152
      %p154 = scmp.ne.s32.totalorder %s142, %s143
      %p155 = scmp.eq.s32.totalorder %s28, 1
      %p156 = por %p154, %p155
      %p158 = scmp.ne.s32.totalorder %s143, %s157
      %p159 = scmp.eq.s32.totalorder %s28, 0
      %p160 = por %p158, %p159
      %s162 = sadd.s32 %s161, 1
      %p165 = scmp.eq.s32.totalorder %s22, 1
      %p166 = scmp.ne.s32.totalorder %s161, %s163
      %p167 = scmp.eq.s32.totalorder %s22, 0
      %p168 = por %p166, %p167
      %p169 = scmp.ne.s32.totalorder %s161, %s163
      %p170 = scmp.eq.s32.totalorder %s27, 1
      %p171 = por %p169, %p170
      %p172 = scmp.ne.s32.totalorder %s163, %s164
      %p173 = scmp.eq.s32.totalorder %s27, 0
      %p174 = por %p172, %p173
      %p175 = scmp.ne.s32.totalorder %s163, %s164
      %p176 = scmp.eq.s32.totalorder %s28, 1
      %p177 = por %p175, %p176
      %p179 = scmp.ne.s32.totalorder %s164, %s178
      %p180 = scmp.eq.s32.totalorder %s28, 0
      %p181 = por %p179, %p180
      %s182 = ssub.s32 %s22, %s29
      %p183 = scmp.eq.s32.totalorder %s182, 0
      %s185 = sadd.s32 %s184, 1
      %s186 = scalar_select %p183, %s184, %s185
      %p189 = pneg %p183
      %p190 = scmp.eq.s32.totalorder %s22, 1
      %p191 = por %p189, %p190
      %p192 = scmp.ne.s32.totalorder %s184, %s187
      %p193 = scmp.eq.s32.totalorder %s22, 0
      %p194 = por %p192, %p193
      %p195 = scmp.ne.s32.totalorder %s184, %s187
      %p196 = scmp.eq.s32.totalorder %s27, 1
      %p197 = por %p195, %p196
      %p198 = scmp.ne.s32.totalorder %s187, %s188
      %p199 = scmp.eq.s32.totalorder %s27, 0
      %p200 = por %p198, %p199
      %p201 = scmp.ne.s32.totalorder %s187, %s188
      %p202 = scmp.eq.s32.totalorder %s28, 1
      %p203 = por %p201, %p202
      %p205 = scmp.ne.s32.totalorder %s188, %s204
      %p206 = scmp.eq.s32.totalorder %s28, 0
      %p207 = por %p205, %p206
      %p208 = scmp.le.s32.totalorder 1, %s22
      %p209 = scmp.lt.s32.totalorder %s22, 3
      %p210 = pnand %p208, %p209
      %p211 = pneg %p210
      // Predicated region
      $region9: #{inverted_residual_pallas.1} parent=5 // pred_check
        _
      $region10: #{inverted_residual_pallas.1} parent=5 // pred_check_branch
        %213 = sbr.rel (%p210) target = $region12
      $region11: #{inverted_residual_pallas.1} parent=5 // pred_region
        %s214 = ssub.s32 %s22, 1
        // Predicated region
        $region13: #{inverted_residual_pallas.1} parent=11 // pred_check
          %p215 = pneg %p69
        $region14: #{inverted_residual_pallas.1} parent=11 // pred_check_branch
          %217 = sbr.rel (%p215) target = $region16
        $region15: #{inverted_residual_pallas.1} parent=11 // pred_region
          %s219 = ssub.s32 64, 64
          %220 = vsyncadd [#allocation7], %s219
          %s222 = sshll.u32 [#allocation6], 4
          %s223 = int_to_ptr.vmem [resolvable:$true] %s222
          %225 = dma.hbm_to_vmem [thread:$0]  %s1, 64, %s223, [#allocation7]
        $region16: #{inverted_residual_pallas.1} parent=11 // pred_fallthru
          _
        // Predicated region
        $region17: #{inverted_residual_pallas.1} parent=11 // pred_check
          %p226 = pneg %p90
        $region18: #{inverted_residual_pallas.1} parent=11 // pred_check_branch
          %228 = sbr.rel (%p226) target = $region20
        $region19: #{inverted_residual_pallas.1} parent=11 // pred_region
          %s230 = ssub.s32 16, 16
          %231 = vsyncadd [#allocation7], %s230
          %s233 = sshll.u32 [#allocation8], 4
          %s234 = int_to_ptr.vmem [resolvable:$true] %s233
          %236 = dma.hbm_to_vmem [thread:$0]  %s2, 16, %s234, [#allocation7]
        $region20: #{inverted_residual_pallas.1} parent=11 // pred_fallthru
          _
        // Predicated region
        $region21: #{inverted_residual_pallas.1} parent=11 // pred_check
          %p237 = pneg %p111
        $region22: #{inverted_residual_pallas.1} parent=11 // pred_check_branch
          %239 = sbr.rel (%p237) target = $region24
        $region23: #{inverted_residual_pallas.1} parent=11 // pred_region
          %s241 = ssub.s32 256, 256
          %242 = vsyncadd [#allocation10], %s241
          %s243 = sshll.u32 [#allocation9], 4
          %s244 = int_to_ptr.vmem [resolvable:$true] %s243
          %249 = dma.hbm_to_vmem [thread:$0]  %s3, 256, %s244, [#allocation10], 128, 128, 8
        $region24: #{inverted_residual_pallas.1} parent=11 // pred_fallthru
          _
        // Predicated region
        $region25: #{inverted_residual_pallas.1} parent=11 // pred_check
          %p250 = pneg %p132
        $region26: #{inverted_residual_pallas.1} parent=11 // pred_check_branch
          %252 = sbr.rel (%p250) target = $region28
        $region27: #{inverted_residual_pallas.1} parent=11 // pred_region
          %s254 = ssub.s32 32, 32
          %255 = vsyncadd [#allocation10], %s254
          %s257 = sshll.u32 [#allocation11], 4
          %s258 = int_to_ptr.vmem [resolvable:$true] %s257
          %260 = dma.hbm_to_vmem [thread:$0]  %s4, 32, %s258, [#allocation10]
        $region28: #{inverted_residual_pallas.1} parent=11 // pred_fallthru
          _
        // Predicated region
        $region29: #{inverted_residual_pallas.1} parent=11 // pred_check
          %p261 = pneg %p153
        $region30: #{inverted_residual_pallas.1} parent=11 // pred_check_branch
          %263 = sbr.rel (%p261) target = $region32
        $region31: #{inverted_residual_pallas.1} parent=11 // pred_region
          %s265 = ssub.s32 64, 64
          %266 = vsyncadd [#allocation13], %s265
          %s268 = sshll.u32 [#allocation12], 4
          %s269 = int_to_ptr.vmem [resolvable:$true] %s268
          %271 = dma.hbm_to_vmem [thread:$0]  %s5, 64, %s269, [#allocation13]
        $region32: #{inverted_residual_pallas.1} parent=11 // pred_fallthru
          _
        // Predicated region
        $region33: #{inverted_residual_pallas.1} parent=11 // pred_check
          %p272 = pneg %p174
        $region34: #{inverted_residual_pallas.1} parent=11 // pred_check_branch
          %274 = sbr.rel (%p272) target = $region36
        $region35: #{inverted_residual_pallas.1} parent=11 // pred_region
          %s276 = ssub.s32 16, 16
          %277 = vsyncadd [#allocation13], %s276
          %s279 = sshll.u32 [#allocation14], 4
          %s280 = int_to_ptr.vmem [resolvable:$true] %s279
          %282 = dma.hbm_to_vmem [thread:$0]  %s6, 16, %s280, [#allocation13]
        $region36: #{inverted_residual_pallas.1} parent=11 // pred_fallthru
          _
      $region12: #{inverted_residual_pallas.1} parent=5 // pred_fallthru
        _
      %p283 = scmp.lt.s32.totalorder %s22, 2
      // Predicated region
      $region37: #{inverted_residual_pallas.1} parent=5 // pred_check
        %p284 = pneg %p283
      $region38: #{inverted_residual_pallas.1} parent=5 // pred_check_branch
        %286 = sbr.rel (%p284) target = $region40
      $region39: #{inverted_residual_pallas.1} parent=5 // pred_region
        // Predicated region
        $region41: #{inverted_residual_pallas.1} parent=39 // pred_check
          %p287 = pneg %p42
        $region42: #{inverted_residual_pallas.1} parent=39 // pred_check_branch
          %289 = sbr.rel (%p287) target = $region44
        $region43: #{inverted_residual_pallas.1} parent=39 // pred_region
          %s290 = sand.u32 %s32, 1
          %s291 = scalar_lea.sflag [#allocation4], %s290
          %s292 = sand.u32 %s32, 1
          %s293 = smul.addr %s292, 256
          %s294 = scalar_lea.vmem [#allocation3], %s293
          %s296 = ssub.s32 4096, 4096
          %297 = vsyncadd %s291, %s296
          %s298 = smul.addr %s22, 32
          %s299 = smul.addr %s298, 128
          %s300 = scalar_lea.hbm %s0, %s299
          %s301 = sshll.u32 %s294, 4
          %s302 = int_to_ptr.vmem [resolvable:$true] %s301
          %307 = dma.hbm_to_vmem [thread:$0]  %s300, 4096, %s302, %s291, 128, 128, 8
        $region44: #{inverted_residual_pallas.1} parent=39 // pred_fallthru
          _
      $region40: #{inverted_residual_pallas.1} parent=5 // pred_fallthru
        _
      %p308 = scmp.le.s32.totalorder 1, %s22
      %p309 = scmp.lt.s32.totalorder %s22, 3
      %p310 = pnand %p308, %p309
      %p311 = pneg %p310
      // Predicated region
      $region45: #{inverted_residual_pallas.1} parent=5 // pred_check
        _
      $region46: #{inverted_residual_pallas.1} parent=5 // pred_check_branch
        %313 = sbr.rel (%p310) target = $region48
      $region47: #{inverted_residual_pallas.1} parent=5 // pred_region
        %s314 = ssub.s32 %s22, 1
        %s315 = sand.u32 %s35, 1
        %s316 = scalar_lea.sflag [#allocation4], %s315
        %s317 = sand.u32 %s35, 1
        %s318 = smul.addr %s317, 256
        %s319 = scalar_lea.vmem [#allocation3], %s318
        // Predicated region
        $region49: #{inverted_residual_pallas.1} parent=47 // pred_check
          %p320 = pneg %p48
        $region50: #{inverted_residual_pallas.1} parent=47 // pred_check_branch
          %322 = sbr.rel (%p320) target = $region52
        $region51: #{inverted_residual_pallas.1} parent=47 // pred_region
          %323 = dma.done %s316, 4096
        $region52: #{inverted_residual_pallas.1} parent=47 // pred_fallthru
          _
        // Predicated region
        $region53: #{inverted_residual_pallas.1} parent=47 // pred_check
          %p324 = pneg %p69
        $region54: #{inverted_residual_pallas.1} parent=47 // pred_check_branch
          %326 = sbr.rel (%p324) target = $region56
        $region55: #{inverted_residual_pallas.1} parent=47 // pred_region
          %327 = dma.done [#allocation7], 64
        $region56: #{inverted_residual_pallas.1} parent=47 // pred_fallthru
          _
        // Predicated region
        $region57: #{inverted_residual_pallas.1} parent=47 // pred_check
          %p328 = pneg %p90
        $region58: #{inverted_residual_pallas.1} parent=47 // pred_check_branch
          %330 = sbr.rel (%p328) target = $region60
        $region59: #{inverted_residual_pallas.1} parent=47 // pred_region
          %331 = dma.done [#allocation7], 16
        $region60: #{inverted_residual_pallas.1} parent=47 // pred_fallthru
          _
        // Predicated region
        $region61: #{inverted_residual_pallas.1} parent=47 // pred_check
          %p332 = pneg %p111
        $region62: #{inverted_residual_pallas.1} parent=47 // pred_check_branch
          %334 = sbr.rel (%p332) target = $region64
        $region63: #{inverted_residual_pallas.1} parent=47 // pred_region
          %335 = dma.done [#allocation10], 256
        $region64: #{inverted_residual_pallas.1} parent=47 // pred_fallthru
          _
        // Predicated region
        $region65: #{inverted_residual_pallas.1} parent=47 // pred_check
          %p336 = pneg %p132
        $region66: #{inverted_residual_pallas.1} parent=47 // pred_check_branch
          %338 = sbr.rel (%p336) target = $region68
        $region67: #{inverted_residual_pallas.1} parent=47 // pred_region
          %339 = dma.done [#allocation10], 32
        $region68: #{inverted_residual_pallas.1} parent=47 // pred_fallthru
          _
        // Predicated region
        $region69: #{inverted_residual_pallas.1} parent=47 // pred_check
          %p340 = pneg %p153
        $region70: #{inverted_residual_pallas.1} parent=47 // pred_check_branch
          %342 = sbr.rel (%p340) target = $region72
        $region71: #{inverted_residual_pallas.1} parent=47 // pred_region
          %343 = dma.done [#allocation13], 64
        $region72: #{inverted_residual_pallas.1} parent=47 // pred_fallthru
          _
        // Predicated region
        $region73: #{inverted_residual_pallas.1} parent=47 // pred_check
          %p344 = pneg %p174
        $region74: #{inverted_residual_pallas.1} parent=47 // pred_check_branch
          %346 = sbr.rel (%p344) target = $region76
        $region75: #{inverted_residual_pallas.1} parent=47 // pred_region
          %347 = dma.done [#allocation13], 16
        $region76: #{inverted_residual_pallas.1} parent=47 // pred_fallthru
          _
        %s348 = sand.u32 %s35, 1
        %s349 = scalar_lea.sflag [#allocation4], %s348
        %s350 = sand.u32 %s35, 1
        %s351 = smul.addr %s350, 256
        %s352 = scalar_lea.vmem [#allocation3], %s351
        %p353 = pneg %p48
        %p354 = pneg %p45
        %p355 = pneg %p69
        %p356 = pneg %p66
        %p357 = pneg %p90
        %p358 = pneg %p87
        %p359 = pneg %p111
        %p360 = pneg %p108
        %p361 = pneg %p132
        %p362 = pneg %p129
        %p363 = pneg %p153
        %p364 = pneg %p150
        %p365 = pneg %p174
        %p366 = pneg %p171
        %p367 = pneg %p200
        %p368 = pneg %p197
        %s369 = sand.u32 %s187, 1
        %s370 = scalar_lea.sflag [#allocation5], %s369
        %s371 = sand.u32 %s187, 1
        %s372 = smul.addr %s371, 256
        %s373 = scalar_lea.vmem [#allocation15], %s372
        %v374 = vld [vmem:[%s319] sm:$0xff]
        %v375 = vld [vmem:[%s319 + $0x8] sm:$0xff]
        %v376 = vld [vmem:[%s319 + $0x10] sm:$0xff]
        %v377 = vld [vmem:[%s319 + $0x18] sm:$0xff]
        %v378 = vld [vmem:[%s319 + $0x20] sm:$0xff]
        %v379 = vld [vmem:[%s319 + $0x28] sm:$0xff]
        %v380 = vld [vmem:[%s319 + $0x30] sm:$0xff]
        %v381 = vld [vmem:[%s319 + $0x38] sm:$0xff]
        %v382 = vld [vmem:[%s319 + $0x40] sm:$0xff]
        %v383 = vld [vmem:[%s319 + $0x48] sm:$0xff]
        %v384 = vld [vmem:[%s319 + $0x50] sm:$0xff]
        %v385 = vld [vmem:[%s319 + $0x58] sm:$0xff]
        %v386 = vld [vmem:[%s319 + $0x60] sm:$0xff]
        %v387 = vld [vmem:[%s319 + $0x68] sm:$0xff]
        %v388 = vld [vmem:[%s319 + $0x70] sm:$0xff]
        %v389 = vld [vmem:[%s319 + $0x78] sm:$0xff]
        %v390 = vld [vmem:[%s319 + $0x80] sm:$0xff]
        %v391 = vld [vmem:[%s319 + $0x88] sm:$0xff]
        %v392 = vld [vmem:[%s319 + $0x90] sm:$0xff]
        %v393 = vld [vmem:[%s319 + $0x98] sm:$0xff]
        %v394 = vld [vmem:[%s319 + $0xa0] sm:$0xff]
        %v395 = vld [vmem:[%s319 + $0xa8] sm:$0xff]
        %v396 = vld [vmem:[%s319 + $0xb0] sm:$0xff]
        %v397 = vld [vmem:[%s319 + $0xb8] sm:$0xff]
        %v398 = vld [vmem:[%s319 + $0xc0] sm:$0xff]
        %v399 = vld [vmem:[%s319 + $0xc8] sm:$0xff]
        %v400 = vld [vmem:[%s319 + $0xd0] sm:$0xff]
        %v401 = vld [vmem:[%s319 + $0xd8] sm:$0xff]
        %v402 = vld [vmem:[%s319 + $0xe0] sm:$0xff]
        %v403 = vld [vmem:[%s319 + $0xe8] sm:$0xff]
        %v404 = vld [vmem:[%s319 + $0xf0] sm:$0xff]
        %v405 = vld [vmem:[%s319 + $0xf8] sm:$0xff]
        %v406 = vld [vmem:[#allocation6] sm:$0xf]
        %v407 = vld [vmem:[#allocation8] sm:$0x1]
        %v409 = vlaneseq
        %v410 = vshrl.u32 %v409, 7
        %v411 = vsub.s32 0, %v410
        %v412 = vrot.slane %v407, %v411
        %vm414 = vcmask 31744
        %v416 = vsel %vm414, %v374, 0
        %v419 = vsel %vm414, %v375, 0
        %v422 = vsel %vm414, %v376, 0
        %v425 = vsel %vm414, %v377, 0
        %v428 = vsel %vm414, %v378, 0
        %v431 = vsel %vm414, %v379, 0
        %v434 = vsel %vm414, %v380, 0
        %v437 = vsel %vm414, %v381, 0
        %v440 = vsel %vm414, %v382, 0
        %v443 = vsel %vm414, %v383, 0
        %v446 = vsel %vm414, %v384, 0
        %v449 = vsel %vm414, %v385, 0
        %v452 = vsel %vm414, %v386, 0
        %v455 = vsel %vm414, %v387, 0
        %v458 = vsel %vm414, %v388, 0
        %v461 = vsel %vm414, %v389, 0
        %v464 = vsel %vm414, %v390, 0
        %v467 = vsel %vm414, %v391, 0
        %v470 = vsel %vm414, %v392, 0
        %v473 = vsel %vm414, %v393, 0
        %v476 = vsel %vm414, %v394, 0
        %v479 = vsel %vm414, %v395, 0
        %v482 = vsel %vm414, %v396, 0
        %v485 = vsel %vm414, %v397, 0
        %v488 = vsel %vm414, %v398, 0
        %v491 = vsel %vm414, %v399, 0
        %v494 = vsel %vm414, %v400, 0
        %v497 = vsel %vm414, %v401, 0
        %v500 = vsel %vm414, %v402, 0
        %v503 = vsel %vm414, %v403, 0
        %v506 = vsel %vm414, %v404, 0
        %v509 = vsel %vm414, %v405, 0
        %vm511 = vcmask 1043456
        %v513 = vsel %vm511, %v406, 0
        %515 = vmatprep.subr.mxu0 0.0
        %516 = vmatpush1.msra.mxu0 %v513
        %517 = vmatprep.subr.mxu0 0.0
        %518 = vmatpush1.msra.mxu0 0.0
        %519 = vmatprep.subr.mxu0 0.0
        %520 = vmatpush1.msra.mxu0 0.0
        %521 = vmatprep.subr.mxu0 0.0
        %522 = vmatpush1.msra.mxu0 0.0
        %523 = vmatprep.subr.mxu0 0.0
        %524 = vmatpush1.msra.mxu0 0.0
        %525 = vmatprep.subr.mxu0 0.0
        %526 = vmatpush1.msra.mxu0 0.0
        %527 = vmatprep.subr.mxu0 0.0
        %528 = vmatpush1.msra.mxu0 0.0
        %529 = vmatprep.subr.mxu0 0.0
        %530 = vmatpush1.msra.mxu0 0.0
        %531 = vmatprep.subr.mxu0 0.0
        %532 = vmatpush1.msra.mxu0 0.0
        %533 = vmatprep.subr.mxu0 0.0
        %534 = vmatpush1.msra.mxu0 0.0
        %535 = vmatprep.subr.mxu0 0.0
        %536 = vmatpush1.msra.mxu0 0.0
        %537 = vmatprep.subr.mxu0 0.0
        %538 = vmatpush1.msra.mxu0 0.0
        %539 = vmatprep.subr.mxu0 0.0
        %540 = vmatpush1.msra.mxu0 0.0
        %541 = vmatprep.subr.mxu0 0.0
        %542 = vmatpush1.msra.mxu0 0.0
        %543 = vmatprep.subr.mxu0 0.0
        %544 = vmatpush1.msra.mxu0 0.0
        %545 = vmatprep.subr.mxu0 0.0
        %546 = vmatpush1.msra.mxu0 0.0
        %547 = vmatprep.subr.mxu0 0.0
        %548 = vmatpush1.msra.mxu0 0.0
        %549 = vmatprep.subr.mxu0 0.0
        %550 = vmatpush1.msra.mxu0 0.0
        %551 = vmatprep.subr.mxu0 0.0
        %552 = vmatpush1.msra.mxu0 0.0
        %553 = vmatprep.subr.mxu0 0.0
        %554 = vmatpush1.msra.mxu0 0.0
        %555 = vmatprep.subr.mxu0 0.0
        %556 = vmatpush1.msra.mxu0 0.0
        %557 = vmatprep.subr.mxu0 0.0
        %558 = vmatpush1.msra.mxu0 0.0
        %559 = vmatprep.subr.mxu0 0.0
        %560 = vmatpush1.msra.mxu0 0.0
        %561 = vmatprep.subr.mxu0 0.0
        %562 = vmatpush1.msra.mxu0 0.0
        %563 = vmatprep.subr.mxu0 0.0
        %564 = vmatpush1.msra.mxu0 0.0
        %565 = vmatprep.subr.mxu0 0.0
        %566 = vmatpush1.msra.mxu0 0.0
        %567 = vmatprep.subr.mxu0 0.0
        %568 = vmatpush1.msra.mxu0 0.0
        %569 = vmatprep.subr.mxu0 0.0
        %570 = vmatpush1.msra.mxu0 0.0
        %571 = vmatprep.subr.mxu0 0.0
        %572 = vmatpush1.msra.mxu0 0.0
        %573 = vmatprep.subr.mxu0 0.0
        %574 = vmatpush1.msra.mxu0 0.0
        %575 = vmatprep.subr.mxu0 0.0
        %576 = vmatpush1.msra.mxu0 0.0
        %577 = vmatprep.subr.mxu0 0.0
        %578 = vmatpush1.msra.mxu0 0.0
        %579 = vmatprep.mubr.f32.mxu0 0.0
        %580 = vmatmul.mubr.f32.gmra.mrb[0].mxu0 %v416
        %v581 = vpop.f32.mrb[0].mxu0
        %v582 = vadd.f32 %v412, %v581
        %v583 = vpop.f32.mrb[0].mxu0
        %584 = vmatprep.mubr.f32.mxu0 0.0
        %585 = vmatmul.mubr.f32.gmra.mrb[0].mxu0 %v419
        %v586 = vpop.f32.mrb[0].mxu0
        %v587 = vadd.f32 %v412, %v586
        %v588 = vpop.f32.mrb[0].mxu0
        %589 = vmatprep.mubr.f32.mxu0 0.0
        %590 = vmatmul.mubr.f32.gmra.mrb[0].mxu0 %v422
        %v591 = vpop.f32.mrb[0].mxu0
        %v592 = vadd.f32 %v412, %v591
        %v593 = vpop.f32.mrb[0].mxu0
        %594 = vmatprep.mubr.f32.mxu0 0.0
        %595 = vmatmul.mubr.f32.gmra.mrb[0].mxu0 %v425
        %v596 = vpop.f32.mrb[0].mxu0
        %v597 = vadd.f32 %v412, %v596
        %v598 = vpop.f32.mrb[0].mxu0
        %599 = vmatprep.mubr.f32.mxu0 0.0
        %600 = vmatmul.mubr.f32.gmra.mrb[0].mxu0 %v428
        %v601 = vpop.f32.mrb[0].mxu0
        %v602 = vadd.f32 %v412, %v601
        %v603 = vpop.f32.mrb[0].mxu0
        %604 = vmatprep.mubr.f32.mxu0 0.0
        %605 = vmatmul.mubr.f32.gmra.mrb[0].mxu0 %v431
        %v606 = vpop.f32.mrb[0].mxu0
        %v607 = vadd.f32 %v412, %v606
        %v608 = vpop.f32.mrb[0].mxu0
        %609 = vmatprep.mubr.f32.mxu0 0.0
        %610 = vmatmul.mubr.f32.gmra.mrb[0].mxu0 %v434
        %v611 = vpop.f32.mrb[0].mxu0
        %v612 = vadd.f32 %v412, %v611
        %v613 = vpop.f32.mrb[0].mxu0
        %614 = vmatprep.mubr.f32.mxu0 0.0
        %615 = vmatmul.mubr.f32.gmra.mrb[0].mxu0 %v437
        %v616 = vpop.f32.mrb[0].mxu0
        %v617 = vadd.f32 %v412, %v616
        %v618 = vpop.f32.mrb[0].mxu0
        %619 = vmatprep.mubr.f32.mxu0 0.0
        %620 = vmatmul.mubr.f32.gmra.mrb[0].mxu0 %v440
        %v621 = vpop.f32.mrb[0].mxu0
        %v622 = vadd.f32 %v412, %v621
        %v623 = vpop.f32.mrb[0].mxu0
        %624 = vmatprep.mubr.f32.mxu0 0.0
        %625 = vmatmul.mubr.f32.gmra.mrb[0].mxu0 %v443
        %v626 = vpop.f32.mrb[0].mxu0
        %v627 = vadd.f32 %v412, %v626
        %v628 = vpop.f32.mrb[0].mxu0
        %629 = vmatprep.mubr.f32.mxu0 0.0
        %630 = vmatmul.mubr.f32.gmra.mrb[0].mxu0 %v446
        %v631 = vpop.f32.mrb[0].mxu0
        %v632 = vadd.f32 %v412, %v631
        %v633 = vpop.f32.mrb[0].mxu0
        %634 = vmatprep.mubr.f32.mxu0 0.0
        %635 = vmatmul.mubr.f32.gmra.mrb[0].mxu0 %v449
        %v636 = vpop.f32.mrb[0].mxu0
        %v637 = vadd.f32 %v412, %v636
        %v638 = vpop.f32.mrb[0].mxu0
        %639 = vmatprep.mubr.f32.mxu0 0.0
        %640 = vmatmul.mubr.f32.gmra.mrb[0].mxu0 %v452
        %v641 = vpop.f32.mrb[0].mxu0
        %v642 = vadd.f32 %v412, %v641
        %v643 = vpop.f32.mrb[0].mxu0
        %644 = vmatprep.mubr.f32.mxu0 0.0
        %645 = vmatmul.mubr.f32.gmra.mrb[0].mxu0 %v455
        %v646 = vpop.f32.mrb[0].mxu0
        %v647 = vadd.f32 %v412, %v646
        %v648 = vpop.f32.mrb[0].mxu0
        %649 = vmatprep.mubr.f32.mxu0 0.0
        %650 = vmatmul.mubr.f32.gmra.mrb[0].mxu0 %v458
        %v651 = vpop.f32.mrb[0].mxu0
        %v652 = vadd.f32 %v412, %v651
        %v653 = vpop.f32.mrb[0].mxu0
        %654 = vmatprep.mubr.f32.mxu0 0.0
        %655 = vmatmul.mubr.f32.gmra.mrb[0].mxu0 %v461
        %v656 = vpop.f32.mrb[0].mxu0
        %v657 = vadd.f32 %v412, %v656
        %v658 = vpop.f32.mrb[0].mxu0
        %659 = vmatprep.mubr.f32.mxu0 0.0
        %660 = vmatmul.mubr.f32.gmra.mrb[0].mxu0 %v464
        %v661 = vpop.f32.mrb[0].mxu0
        %v662 = vadd.f32 %v412, %v661
        %v663 = vpop.f32.mrb[0].mxu0
        %664 = vmatprep.mubr.f32.mxu0 0.0
        %665 = vmatmul.mubr.f32.gmra.mrb[0].mxu0 %v467
        %v666 = vpop.f32.mrb[0].mxu0
        %v667 = vadd.f32 %v412, %v666
        %v668 = vpop.f32.mrb[0].mxu0
        %669 = vmatprep.mubr.f32.mxu0 0.0
        %670 = vmatmul.mubr.f32.gmra.mrb[0].mxu0 %v470
        %v671 = vpop.f32.mrb[0].mxu0
        %v672 = vadd.f32 %v412, %v671
        %v673 = vpop.f32.mrb[0].mxu0
        %674 = vmatprep.mubr.f32.mxu0 0.0
        %675 = vmatmul.mubr.f32.gmra.mrb[0].mxu0 %v473
        %v676 = vpop.f32.mrb[0].mxu0
        %v677 = vadd.f32 %v412, %v676
        %v678 = vpop.f32.mrb[0].mxu0
        %679 = vmatprep.mubr.f32.mxu0 0.0
        %680 = vmatmul.mubr.f32.gmra.mrb[0].mxu0 %v476
        %v681 = vpop.f32.mrb[0].mxu0
        %v682 = vadd.f32 %v412, %v681
        %v683 = vpop.f32.mrb[0].mxu0
        %684 = vmatprep.mubr.f32.mxu0 0.0
        %685 = vmatmul.mubr.f32.gmra.mrb[0].mxu0 %v479
        %v686 = vpop.f32.mrb[0].mxu0
        %v687 = vadd.f32 %v412, %v686
        %v688 = vpop.f32.mrb[0].mxu0
        %689 = vmatprep.mubr.f32.mxu0 0.0
        %690 = vmatmul.mubr.f32.gmra.mrb[0].mxu0 %v482
        %v691 = vpop.f32.mrb[0].mxu0
        %v692 = vadd.f32 %v412, %v691
        %v693 = vpop.f32.mrb[0].mxu0
        %694 = vmatprep.mubr.f32.mxu0 0.0
        %695 = vmatmul.mubr.f32.gmra.mrb[0].mxu0 %v485
        %v696 = vpop.f32.mrb[0].mxu0
        %v697 = vadd.f32 %v412, %v696
        %v698 = vpop.f32.mrb[0].mxu0
        %699 = vmatprep.mubr.f32.mxu0 0.0
        %700 = vmatmul.mubr.f32.gmra.mrb[0].mxu0 %v488
        %v701 = vpop.f32.mrb[0].mxu0
        %v702 = vadd.f32 %v412, %v701
        %v703 = vpop.f32.mrb[0].mxu0
        %704 = vmatprep.mubr.f32.mxu0 0.0
        %705 = vmatmul.mubr.f32.gmra.mrb[0].mxu0 %v491
        %v706 = vpop.f32.mrb[0].mxu0
        %v707 = vadd.f32 %v412, %v706
        %v708 = vpop.f32.mrb[0].mxu0
        %709 = vmatprep.mubr.f32.mxu0 0.0
        %710 = vmatmul.mubr.f32.gmra.mrb[0].mxu0 %v494
        %v711 = vpop.f32.mrb[0].mxu0
        %v712 = vadd.f32 %v412, %v711
        %v713 = vpop.f32.mrb[0].mxu0
        %714 = vmatprep.mubr.f32.mxu0 0.0
        %715 = vmatmul.mubr.f32.gmra.mrb[0].mxu0 %v497
        %v716 = vpop.f32.mrb[0].mxu0
        %v717 = vadd.f32 %v412, %v716
        %v718 = vpop.f32.mrb[0].mxu0
        %719 = vmatprep.mubr.f32.mxu0 0.0
        %720 = vmatmul.mubr.f32.gmra.mrb[0].mxu0 %v500
        %v721 = vpop.f32.mrb[0].mxu0
        %v722 = vadd.f32 %v412, %v721
        %v723 = vpop.f32.mrb[0].mxu0
        %724 = vmatprep.mubr.f32.mxu0 0.0
        %725 = vmatmul.mubr.f32.gmra.mrb[0].mxu0 %v503
        %v726 = vpop.f32.mrb[0].mxu0
        %v727 = vadd.f32 %v412, %v726
        %v728 = vpop.f32.mrb[0].mxu0
        %729 = vmatprep.mubr.f32.mxu0 0.0
        %730 = vmatmul.mubr.f32.gmra.mrb[0].mxu0 %v506
        %v731 = vpop.f32.mrb[0].mxu0
        %v732 = vadd.f32 %v412, %v731
        %v733 = vpop.f32.mrb[0].mxu0
        %734 = vmatprep.mubr.f32.mxu0 0.0
        %735 = vmatmul.mubr.f32.gmra.mrb[0].mxu0 %v509
        %v736 = vpop.f32.mrb[0].mxu0
        %v737 = vadd.f32 %v412, %v736
        %v738 = vpop.f32.mrb[0].mxu0
        %739 = vdwg.mxu0
        %v740 = vmax.f32 %v582, 0.0
        %v741 = vmax.f32 %v587, 0.0
        %v742 = vmax.f32 %v592, 0.0
        %v743 = vmax.f32 %v597, 0.0
        %v744 = vmax.f32 %v602, 0.0
        %v745 = vmax.f32 %v607, 0.0
        %v746 = vmax.f32 %v612, 0.0
        %v747 = vmax.f32 %v617, 0.0
        %v748 = vmax.f32 %v622, 0.0
        %v749 = vmax.f32 %v627, 0.0
        %v750 = vmax.f32 %v632, 0.0
        %v751 = vmax.f32 %v637, 0.0
        %v752 = vmax.f32 %v642, 0.0
        %v753 = vmax.f32 %v647, 0.0
        %v754 = vmax.f32 %v652, 0.0
        %v755 = vmax.f32 %v657, 0.0
        %v756 = vmax.f32 %v662, 0.0
        %v757 = vmax.f32 %v667, 0.0
        %v758 = vmax.f32 %v672, 0.0
        %v759 = vmax.f32 %v677, 0.0
        %v760 = vmax.f32 %v682, 0.0
        %v761 = vmax.f32 %v687, 0.0
        %v762 = vmax.f32 %v692, 0.0
        %v763 = vmax.f32 %v697, 0.0
        %v764 = vmax.f32 %v702, 0.0
        %v765 = vmax.f32 %v707, 0.0
        %v766 = vmax.f32 %v712, 0.0
        %v767 = vmax.f32 %v717, 0.0
        %v768 = vmax.f32 %v722, 0.0
        %v769 = vmax.f32 %v727, 0.0
        %v770 = vmax.f32 %v732, 0.0
        %v771 = vmax.f32 %v737, 0.0
        %vm772 = vcmask 15360
        %773 = vst.msk [vmem:[#allocation2] sm:$0xff] %vm772, 0.0
        %774 = vst.msk [vmem:[#allocation2 + $0x8] sm:$0xff] %vm772, 0.0
        %vm775 = vcmask 9216
        %776 = vst.msk [vmem:[#allocation2 + $0x10] sm:$0x3] %vm775, 0.0
        %777 = vst.msk [vmem:[#allocation2 + $0x18] sm:$0xff] %vm772, 0.0
        %778 = vst.msk [vmem:[#allocation2 + $0x20] sm:$0xff] %vm772, 0.0
        %779 = vst.msk [vmem:[#allocation2 + $0x28] sm:$0x3] %vm775, 0.0
        %780 = vst.msk [vmem:[#allocation2 + $0x30] sm:$0xff] %vm772, 0.0
        %781 = vst.msk [vmem:[#allocation2 + $0x38] sm:$0xff] %vm772, 0.0
        %782 = vst.msk [vmem:[#allocation2 + $0x40] sm:$0x3] %vm775, 0.0
        %783 = vst.msk [vmem:[#allocation2 + $0x48] sm:$0xff] %vm772, 0.0
        %784 = vst.msk [vmem:[#allocation2 + $0x50] sm:$0xff] %vm772, 0.0
        %785 = vst.msk [vmem:[#allocation2 + $0x58] sm:$0x3] %vm775, 0.0
        %786 = vst.msk [vmem:[#allocation2 + $0x60] sm:$0xff] %vm772, 0.0
        %787 = vst.msk [vmem:[#allocation2 + $0x68] sm:$0xff] %vm772, 0.0
        %788 = vst.msk [vmem:[#allocation2 + $0x70] sm:$0x3] %vm775, 0.0
        %789 = vst.msk [vmem:[#allocation2 + $0x78] sm:$0xff] %vm772, 0.0
        %790 = vst.msk [vmem:[#allocation2 + $0x80] sm:$0xff] %vm772, 0.0
        %791 = vst.msk [vmem:[#allocation2 + $0x88] sm:$0x3] %vm775, 0.0
        %792 = vst.msk [vmem:[#allocation2 + $0x90] sm:$0xff] %vm772, 0.0
        %793 = vst.msk [vmem:[#allocation2 + $0x98] sm:$0xff] %vm772, 0.0
        %794 = vst.msk [vmem:[#allocation2 + $0xa0] sm:$0x3] %vm775, 0.0
        %795 = vst.msk [vmem:[#allocation2 + $0xa8] sm:$0xff] %vm772, 0.0
        %796 = vst.msk [vmem:[#allocation2 + $0xb0] sm:$0xff] %vm772, 0.0
        %797 = vst.msk [vmem:[#allocation2 + $0xb8] sm:$0x3] %vm775, 0.0
        %798 = vst.msk [vmem:[#allocation2 + $0xc0] sm:$0xff] %vm772, 0.0
        %799 = vst.msk [vmem:[#allocation2 + $0xc8] sm:$0xff] %vm772, 0.0
        %800 = vst.msk [vmem:[#allocation2 + $0xd0] sm:$0x3] %vm775, 0.0
        %801 = vst.msk [vmem:[#allocation2 + $0xd8] sm:$0xff] %vm772, 0.0
        %802 = vst.msk [vmem:[#allocation2 + $0xe0] sm:$0xff] %vm772, 0.0
        %803 = vst.msk [vmem:[#allocation2 + $0xe8] sm:$0x3] %vm775, 0.0
        %804 = vst.msk [vmem:[#allocation2 + $0xf0] sm:$0xff] %vm772, 0.0
        %805 = vst.msk [vmem:[#allocation2 + $0xf8] sm:$0xff] %vm772, 0.0
        %806 = vst.msk [vmem:[#allocation2 + $0x100] sm:$0x3] %vm775, 0.0
        %807 = vst.msk [vmem:[#allocation2 + $0x108] sm:$0xff] %vm772, 0.0
        %808 = vst.msk [vmem:[#allocation2 + $0x110] sm:$0xff] %vm772, 0.0
        %809 = vst.msk [vmem:[#allocation2 + $0x118] sm:$0x3] %vm775, 0.0
        %810 = vst.msk [vmem:[#allocation2 + $0x120] sm:$0xff] %vm772, 0.0
        %811 = vst.msk [vmem:[#allocation2 + $0x128] sm:$0xff] %vm772, 0.0
        %812 = vst.msk [vmem:[#allocation2 + $0x130] sm:$0x3] %vm775, 0.0
        %813 = vst.msk [vmem:[#allocation2 + $0x138] sm:$0xff] %vm772, 0.0
        %814 = vst.msk [vmem:[#allocation2 + $0x140] sm:$0xff] %vm772, 0.0
        %815 = vst.msk [vmem:[#allocation2 + $0x148] sm:$0x3] %vm775, 0.0
        %816 = vst.msk [vmem:[#allocation2 + $0x150] sm:$0xff] %vm772, 0.0
        %817 = vst.msk [vmem:[#allocation2 + $0x158] sm:$0xff] %vm772, 0.0
        %818 = vst.msk [vmem:[#allocation2 + $0x160] sm:$0x3] %vm775, 0.0
        %819 = vst.msk [vmem:[#allocation2 + $0x168] sm:$0xff] %vm772, 0.0
        %820 = vst.msk [vmem:[#allocation2 + $0x170] sm:$0xff] %vm772, 0.0
        %821 = vst.msk [vmem:[#allocation2 + $0x178] sm:$0x3] %vm775, 0.0
        %822 = vst.msk [vmem:[#allocation2 + $0x180] sm:$0xff] %vm772, 0.0
        %823 = vst.msk [vmem:[#allocation2 + $0x188] sm:$0xff] %vm772, 0.0
        %824 = vst.msk [vmem:[#allocation2 + $0x190] sm:$0x3] %vm775, 0.0
        %825 = vst.msk [vmem:[#allocation2 + $0x198] sm:$0xff] %vm772, 0.0
        %826 = vst.msk [vmem:[#allocation2 + $0x1a0] sm:$0xff] %vm772, 0.0
        %827 = vst.msk [vmem:[#allocation2 + $0x1a8] sm:$0x3] %vm775, 0.0
        %s828 = scalar_lea.vmem [#allocation2], 24
        %829 = vst.msk [vmem:[%s828 + $0x1] sm:$0xff] %vm772, %v740
        %830 = vst.msk [vmem:[%s828 + $0x9] sm:$0xff] %vm772, %v741
        %831 = vst.msk [vmem:[%s828 + $0x19] sm:$0xff] %vm772, %v742
        %832 = vst.msk [vmem:[%s828 + $0x21] sm:$0xff] %vm772, %v743
        %833 = vst.msk [vmem:[%s828 + $0x31] sm:$0xff] %vm772, %v744
        %834 = vst.msk [vmem:[%s828 + $0x39] sm:$0xff] %vm772, %v745
        %835 = vst.msk [vmem:[%s828 + $0x49] sm:$0xff] %vm772, %v746
        %836 = vst.msk [vmem:[%s828 + $0x51] sm:$0xff] %vm772, %v747
        %837 = vst.msk [vmem:[%s828 + $0x61] sm:$0xff] %vm772, %v748
        %838 = vst.msk [vmem:[%s828 + $0x69] sm:$0xff] %vm772, %v749
        %839 = vst.msk [vmem:[%s828 + $0x79] sm:$0xff] %vm772, %v750
        %840 = vst.msk [vmem:[%s828 + $0x81] sm:$0xff] %vm772, %v751
        %841 = vst.msk [vmem:[%s828 + $0x91] sm:$0xff] %vm772, %v752
        %842 = vst.msk [vmem:[%s828 + $0x99] sm:$0xff] %vm772, %v753
        %843 = vst.msk [vmem:[%s828 + $0xa9] sm:$0xff] %vm772, %v754
        %844 = vst.msk [vmem:[%s828 + $0xb1] sm:$0xff] %vm772, %v755
        %845 = vst.msk [vmem:[%s828 + $0xc1] sm:$0xff] %vm772, %v756
        %846 = vst.msk [vmem:[%s828 + $0xc9] sm:$0xff] %vm772, %v757
        %847 = vst.msk [vmem:[%s828 + $0xd9] sm:$0xff] %vm772, %v758
        %848 = vst.msk [vmem:[%s828 + $0xe1] sm:$0xff] %vm772, %v759
        %849 = vst.msk [vmem:[%s828 + $0xf1] sm:$0xff] %vm772, %v760
        %850 = vst.msk [vmem:[%s828 + $0xf9] sm:$0xff] %vm772, %v761
        %851 = vst.msk [vmem:[%s828 + $0x109] sm:$0xff] %vm772, %v762
        %852 = vst.msk [vmem:[%s828 + $0x111] sm:$0xff] %vm772, %v763
        %853 = vst.msk [vmem:[%s828 + $0x121] sm:$0xff] %vm772, %v764
        %854 = vst.msk [vmem:[%s828 + $0x129] sm:$0xff] %vm772, %v765
        %855 = vst.msk [vmem:[%s828 + $0x139] sm:$0xff] %vm772, %v766
        %856 = vst.msk [vmem:[%s828 + $0x141] sm:$0xff] %vm772, %v767
        %857 = vst.msk [vmem:[%s828 + $0x151] sm:$0xff] %vm772, %v768
        %858 = vst.msk [vmem:[%s828 + $0x159] sm:$0xff] %vm772, %v769
        %859 = vst.msk [vmem:[%s828 + $0x169] sm:$0xff] %vm772, %v770
        %860 = vst.msk [vmem:[%s828 + $0x171] sm:$0xff] %vm772, %v771
        %v861 = vld [vmem:[#allocation2] sm:$0xff]
        %v862 = vld [vmem:[#allocation2 + $0x8] sm:$0xff]
        %v863 = vld [vmem:[#allocation2 + $0x10] sm:$0x3]
        %v864 = vld [vmem:[#allocation2 + $0x18] sm:$0xff]
        %v865 = vld [vmem:[#allocation2 + $0x20] sm:$0xff]
        %v866 = vld [vmem:[#allocation2 + $0x28] sm:$0x3]
        %v867 = vld [vmem:[#allocation2 + $0x30] sm:$0xff]
        %v868 = vld [vmem:[#allocation2 + $0x38] sm:$0xff]
        %v869 = vld [vmem:[#allocation2 + $0x40] sm:$0x3]
        %v870 = vld [vmem:[#allocation2 + $0x48] sm:$0xff]
        %v871 = vld [vmem:[#allocation2 + $0x50] sm:$0xff]
        %v872 = vld [vmem:[#allocation2 + $0x58] sm:$0x3]
        %v873 = vld [vmem:[#allocation2 + $0x60] sm:$0xff]
        %v874 = vld [vmem:[#allocation2 + $0x68] sm:$0xff]
        %v875 = vld [vmem:[#allocation2 + $0x70] sm:$0x3]
        %v876 = vld [vmem:[#allocation2 + $0x78] sm:$0xff]
        %v877 = vld [vmem:[#allocation2 + $0x80] sm:$0xff]
        %v878 = vld [vmem:[#allocation2 + $0x88] sm:$0x3]
        %v879 = vld [vmem:[#allocation2 + $0x90] sm:$0xff]
        %v880 = vld [vmem:[#allocation2 + $0x98] sm:$0xff]
        %v881 = vld [vmem:[#allocation2 + $0xa0] sm:$0x3]
        %v882 = vld [vmem:[#allocation2 + $0xa8] sm:$0xff]
        %v883 = vld [vmem:[#allocation2 + $0xb0] sm:$0xff]
        %v884 = vld [vmem:[#allocation2 + $0xb8] sm:$0x3]
        %v885 = vld [vmem:[#allocation2 + $0xc0] sm:$0xff]
        %v886 = vld [vmem:[#allocation2 + $0xc8] sm:$0xff]
        %v887 = vld [vmem:[#allocation2 + $0xd0] sm:$0x3]
        %v888 = vld [vmem:[#allocation2 + $0xd8] sm:$0xff]
        %v889 = vld [vmem:[#allocation2 + $0xe0] sm:$0xff]
        %v890 = vld [vmem:[#allocation2 + $0xe8] sm:$0x3]
        %v891 = vld [vmem:[#allocation2 + $0xf0] sm:$0xff]
        %v892 = vld [vmem:[#allocation2 + $0xf8] sm:$0xff]
        %v893 = vld [vmem:[#allocation2 + $0x100] sm:$0x3]
        %v894 = vld [vmem:[#allocation2 + $0x108] sm:$0xff]
        %v895 = vld [vmem:[#allocation2 + $0x110] sm:$0xff]
        %v896 = vld [vmem:[#allocation2 + $0x118] sm:$0x3]
        %v897 = vld [vmem:[#allocation2 + $0x120] sm:$0xff]
        %v898 = vld [vmem:[#allocation2 + $0x128] sm:$0xff]
        %v899 = vld [vmem:[#allocation2 + $0x130] sm:$0x3]
        %v900 = vld [vmem:[#allocation2 + $0x138] sm:$0xff]
        %v901 = vld [vmem:[#allocation2 + $0x140] sm:$0xff]
        %v902 = vld [vmem:[#allocation2 + $0x148] sm:$0x3]
        %v903 = vld [vmem:[#allocation2 + $0x150] sm:$0xff]
        %v904 = vld [vmem:[#allocation2 + $0x158] sm:$0xff]
        %v905 = vld [vmem:[#allocation2 + $0x160] sm:$0x3]
        %v906 = vld [vmem:[#allocation2 + $0x168] sm:$0xff]
        %v907 = vld [vmem:[#allocation2 + $0x170] sm:$0xff]
        %v908 = vld [vmem:[#allocation2 + $0x178] sm:$0x3]
        %v909 = vld [vmem:[#allocation2 + $0x180] sm:$0xff]
        %v910 = vld [vmem:[#allocation2 + $0x188] sm:$0xff]
        %v911 = vld [vmem:[#allocation2 + $0x190] sm:$0x3]
        %v912 = vld [vmem:[#allocation2 + $0x198] sm:$0xff]
        %v913 = vld [vmem:[#allocation2 + $0x1a0] sm:$0xff]
        %v914 = vld [vmem:[#allocation2 + $0x1a8] sm:$0x3]
        %v915 = vld [vmem:[#allocation9] sm:$0xff]
        %v916 = vld [vmem:[#allocation9 + $0x8] sm:$0x1]
        %v917 = vlaneseq
        %v918 = vshrl.u32 %v917, 7
        %v919 = vsub.s32 0, %v918
        %v920 = vrot.slane %v915, %v919
        %v921 = vmul.f32 %v861, %v920
        %v922 = vmul.f32 %v862, %v920
        %v923 = vmul.f32 %v864, %v920
        %v924 = vmul.f32 %v865, %v920
        %v925 = vmul.f32 %v867, %v920
        %v926 = vmul.f32 %v868, %v920
        %v927 = vmul.f32 %v870, %v920
        %v928 = vmul.f32 %v871, %v920
        %v929 = vmul.f32 %v873, %v920
        %v930 = vmul.f32 %v874, %v920
        %v931 = vmul.f32 %v876, %v920
        %v932 = vmul.f32 %v877, %v920
        %v933 = vmul.f32 %v879, %v920
        %v934 = vmul.f32 %v880, %v920
        %v935 = vmul.f32 %v882, %v920
        %v936 = vmul.f32 %v883, %v920
        %v937 = vmul.f32 %v885, %v920
        %v938 = vmul.f32 %v886, %v920
        %v939 = vmul.f32 %v888, %v920
        %v940 = vmul.f32 %v889, %v920
        %v941 = vmul.f32 %v891, %v920
        %v942 = vmul.f32 %v892, %v920
        %v943 = vmul.f32 %v894, %v920
        %v944 = vmul.f32 %v895, %v920
        %v945 = vmul.f32 %v897, %v920
        %v946 = vmul.f32 %v898, %v920
        %v947 = vmul.f32 %v900, %v920
        %v948 = vmul.f32 %v901, %v920
        %v949 = vmul.f32 %v903, %v920
        %v950 = vmul.f32 %v904, %v920
        %v951 = vmul.f32 %v906, %v920
        %v952 = vmul.f32 %v907, %v920
        %v953 = vadd.f32 %v921, 0.0
        %v954 = vadd.f32 %v922, 0.0
        %v955 = vadd.f32 %v923, 0.0
        %v956 = vadd.f32 %v924, 0.0
        %v957 = vadd.f32 %v925, 0.0
        %v958 = vadd.f32 %v926, 0.0
        %v959 = vadd.f32 %v927, 0.0
        %v960 = vadd.f32 %v928, 0.0
        %v961 = vadd.f32 %v929, 0.0
        %v962 = vadd.f32 %v930, 0.0
        %v963 = vadd.f32 %v931, 0.0
        %v964 = vadd.f32 %v932, 0.0
        %v965 = vadd.f32 %v933, 0.0
        %v966 = vadd.f32 %v934, 0.0
        %v967 = vadd.f32 %v935, 0.0
        %v968 = vadd.f32 %v936, 0.0
        %v969 = vadd.f32 %v937, 0.0
        %v970 = vadd.f32 %v938, 0.0
        %v971 = vadd.f32 %v939, 0.0
        %v972 = vadd.f32 %v940, 0.0
        %v973 = vadd.f32 %v941, 0.0
        %v974 = vadd.f32 %v942, 0.0
        %v975 = vadd.f32 %v943, 0.0
        %v976 = vadd.f32 %v944, 0.0
        %v977 = vadd.f32 %v945, 0.0
        %v978 = vadd.f32 %v946, 0.0
        %v979 = vadd.f32 %v947, 0.0
        %v980 = vadd.f32 %v948, 0.0
        %v981 = vadd.f32 %v949, 0.0
        %v982 = vadd.f32 %v950, 0.0
        %v983 = vadd.f32 %v951, 0.0
        %v984 = vadd.f32 %v952, 0.0
        %v985 = vlaneseq
        %v986 = vshrl.u32 %v985, 7
        %v987 = vsub.s32 1, %v986
        %v988 = vrot.slane %v915, %v987
        %v989 = vmul.f32 %v861, %v988
        %v990 = vmul.f32 %v862, %v988
        %v991 = vmul.f32 %v863, %v988
        %v992 = vmul.f32 %v864, %v988
        %v993 = vmul.f32 %v865, %v988
        %v994 = vmul.f32 %v866, %v988
        %v995 = vmul.f32 %v867, %v988
        %v996 = vmul.f32 %v868, %v988
        %v997 = vmul.f32 %v869, %v988
        %v998 = vmul.f32 %v870, %v988
        %v999 = vmul.f32 %v871, %v988
        %v1000 = vmul.f32 %v872, %v988
        %v1001 = vmul.f32 %v873, %v988
        %v1002 = vmul.f32 %v874, %v988
        %v1003 = vmul.f32 %v875, %v988
        %v1004 = vmul.f32 %v876, %v988
        %v1005 = vmul.f32 %v877, %v988
        %v1006 = vmul.f32 %v878, %v988
        %v1007 = vmul.f32 %v879, %v988
        %v1008 = vmul.f32 %v880, %v988
        %v1009 = vmul.f32 %v881, %v988
        %v1010 = vmul.f32 %v882, %v988
        %v1011 = vmul.f32 %v883, %v988
        %v1012 = vmul.f32 %v884, %v988
        %v1013 = vmul.f32 %v885, %v988
        %v1014 = vmul.f32 %v886, %v988
        %v1015 = vmul.f32 %v887, %v988
        %v1016 = vmul.f32 %v888, %v988
        %v1017 = vmul.f32 %v889, %v988
        %v1018 = vmul.f32 %v890, %v988
        %v1019 = vmul.f32 %v891, %v988
        %v1020 = vmul.f32 %v892, %v988
        %v1021 = vmul.f32 %v893, %v988
        %v1022 = vmul.f32 %v894, %v988
        %v1023 = vmul.f32 %v895, %v988
        %v1024 = vmul.f32 %v896, %v988
        %v1025 = vmul.f32 %v897, %v988
        %v1026 = vmul.f32 %v898, %v988
        %v1027 = vmul.f32 %v899, %v988
        %v1028 = vmul.f32 %v900, %v988
        %v1029 = vmul.f32 %v901, %v988
        %v1030 = vmul.f32 %v902, %v988
        %v1031 = vmul.f32 %v903, %v988
        %v1032 = vmul.f32 %v904, %v988
        %v1033 = vmul.f32 %v905, %v988
        %v1034 = vmul.f32 %v906, %v988
        %v1035 = vmul.f32 %v907, %v988
        %v1036 = vmul.f32 %v908, %v988
        %vm1085 = vcmask 1046528
        %v1086 = vrot.slane %v989, 1
        %v1087 = vrot.slane %v990, 1
        %v1088 = vsel %vm1085, %v1086, %v1087
        %v1089 = vrot.slane %v991, 1
        %v1090 = vsel %vm1085, %v1087, %v1089
        %v1091 = vrot.slane %v992, 1
        %v1092 = vrot.slane %v993, 1
        %v1093 = vsel %vm1085, %v1091, %v1092
        %v1094 = vrot.slane %v994, 1
        %v1095 = vsel %vm1085, %v1092, %v1094
        %v1096 = vrot.slane %v995, 1
        %v1097 = vrot.slane %v996, 1
        %v1098 = vsel %vm1085, %v1096, %v1097
        %v1099 = vrot.slane %v997, 1
        %v1100 = vsel %vm1085, %v1097, %v1099
        %v1101 = vrot.slane %v998, 1
        %v1102 = vrot.slane %v999, 1
        %v1103 = vsel %vm1085, %v1101, %v1102
        %v1104 = vrot.slane %v1000, 1
        %v1105 = vsel %vm1085, %v1102, %v1104
        %v1106 = vrot.slane %v1001, 1
        %v1107 = vrot.slane %v1002, 1
        %v1108 = vsel %vm1085, %v1106, %v1107
        %v1109 = vrot.slane %v1003, 1
        %v1110 = vsel %vm1085, %v1107, %v1109
        %v1111 = vrot.slane %v1004, 1
        %v1112 = vrot.slane %v1005, 1
        %v1113 = vsel %vm1085, %v1111, %v1112
        %v1114 = vrot.slane %v1006, 1
        %v1115 = vsel %vm1085, %v1112, %v1114
        %v1116 = vrot.slane %v1007, 1
        %v1117 = vrot.slane %v1008, 1
        %v1118 = vsel %vm1085, %v1116, %v1117
        %v1119 = vrot.slane %v1009, 1
        %v1120 = vsel %vm1085, %v1117, %v1119
        %v1121 = vrot.slane %v1010, 1
        %v1122 = vrot.slane %v1011, 1
        %v1123 = vsel %vm1085, %v1121, %v1122
        %v1124 = vrot.slane %v1012, 1
        %v1125 = vsel %vm1085, %v1122, %v1124
        %v1126 = vrot.slane %v1013, 1
        %v1127 = vrot.slane %v1014, 1
        %v1128 = vsel %vm1085, %v1126, %v1127
        %v1129 = vrot.slane %v1015, 1
        %v1130 = vsel %vm1085, %v1127, %v1129
        %v1131 = vrot.slane %v1016, 1
        %v1132 = vrot.slane %v1017, 1
        %v1133 = vsel %vm1085, %v1131, %v1132
        %v1134 = vrot.slane %v1018, 1
        %v1135 = vsel %vm1085, %v1132, %v1134
        %v1136 = vrot.slane %v1019, 1
        %v1137 = vrot.slane %v1020, 1
        %v1138 = vsel %vm1085, %v1136, %v1137
        %v1139 = vrot.slane %v1021, 1
        %v1140 = vsel %vm1085, %v1137, %v1139
        %v1141 = vrot.slane %v1022, 1
        %v1142 = vrot.slane %v1023, 1
        %v1143 = vsel %vm1085, %v1141, %v1142
        %v1144 = vrot.slane %v1024, 1
        %v1145 = vsel %vm1085, %v1142, %v1144
        %v1146 = vrot.slane %v1025, 1
        %v1147 = vrot.slane %v1026, 1
        %v1148 = vsel %vm1085, %v1146, %v1147
        %v1149 = vrot.slane %v1027, 1
        %v1150 = vsel %vm1085, %v1147, %v1149
        %v1151 = vrot.slane %v1028, 1
        %v1152 = vrot.slane %v1029, 1
        %v1153 = vsel %vm1085, %v1151, %v1152
        %v1154 = vrot.slane %v1030, 1
        %v1155 = vsel %vm1085, %v1152, %v1154
        %v1156 = vrot.slane %v1031, 1
        %v1157 = vrot.slane %v1032, 1
        %v1158 = vsel %vm1085, %v1156, %v1157
        %v1159 = vrot.slane %v1033, 1
        %v1160 = vsel %vm1085, %v1157, %v1159
        %v1161 = vrot.slane %v1034, 1
        %v1162 = vrot.slane %v1035, 1
        %v1163 = vsel %vm1085, %v1161, %v1162
        %v1164 = vrot.slane %v1036, 1
        %v1165 = vsel %vm1085, %v1162, %v1164
        %v1198 = vadd.f32 %v953, %v1088
        %v1199 = vadd.f32 %v954, %v1090
        %v1200 = vadd.f32 %v955, %v1093
        %v1201 = vadd.f32 %v956, %v1095
        %v1202 = vadd.f32 %v957, %v1098
        %v1203 = vadd.f32 %v958, %v1100
        %v1204 = vadd.f32 %v959, %v1103
        %v1205 = vadd.f32 %v960, %v1105
        %v1206 = vadd.f32 %v961, %v1108
        %v1207 = vadd.f32 %v962, %v1110
        %v1208 = vadd.f32 %v963, %v1113
        %v1209 = vadd.f32 %v964, %v1115
        %v1210 = vadd.f32 %v965, %v1118
        %v1211 = vadd.f32 %v966, %v1120
        %v1212 = vadd.f32 %v967, %v1123
        %v1213 = vadd.f32 %v968, %v1125
        %v1214 = vadd.f32 %v969, %v1128
        %v1215 = vadd.f32 %v970, %v1130
        %v1216 = vadd.f32 %v971, %v1133
        %v1217 = vadd.f32 %v972, %v1135
        %v1218 = vadd.f32 %v973, %v1138
        %v1219 = vadd.f32 %v974, %v1140
        %v1220 = vadd.f32 %v975, %v1143
        %v1221 = vadd.f32 %v976, %v1145
        %v1222 = vadd.f32 %v977, %v1148
        %v1223 = vadd.f32 %v978, %v1150
        %v1224 = vadd.f32 %v979, %v1153
        %v1225 = vadd.f32 %v980, %v1155
        %v1226 = vadd.f32 %v981, %v1158
        %v1227 = vadd.f32 %v982, %v1160
        %v1228 = vadd.f32 %v983, %v1163
        %v1229 = vadd.f32 %v984, %v1165
        %v1230 = vlaneseq
        %v1231 = vshrl.u32 %v1230, 7
        %v1232 = vsub.s32 2, %v1231
        %v1233 = vrot.slane %v915, %v1232
        %v1234 = vmul.f32 %v861, %v1233
        %v1235 = vmul.f32 %v862, %v1233
        %v1236 = vmul.f32 %v863, %v1233
        %v1237 = vmul.f32 %v864, %v1233
        %v1238 = vmul.f32 %v865, %v1233
        %v1239 = vmul.f32 %v866, %v1233
        %v1240 = vmul.f32 %v867, %v1233
        %v1241 = vmul.f32 %v868, %v1233
        %v1242 = vmul.f32 %v869, %v1233
        %v1243 = vmul.f32 %v870, %v1233
        %v1244 = vmul.f32 %v871, %v1233
        %v1245 = vmul.f32 %v872, %v1233
        %v1246 = vmul.f32 %v873, %v1233
        %v1247 = vmul.f32 %v874, %v1233
        %v1248 = vmul.f32 %v875, %v1233
        %v1249 = vmul.f32 %v876, %v1233
        %v1250 = vmul.f32 %v877, %v1233
        %v1251 = vmul.f32 %v878, %v1233
        %v1252 = vmul.f32 %v879, %v1233
        %v1253 = vmul.f32 %v880, %v1233
        %v1254 = vmul.f32 %v881, %v1233
        %v1255 = vmul.f32 %v882, %v1233
        %v1256 = vmul.f32 %v883, %v1233
        %v1257 = vmul.f32 %v884, %v1233
        %v1258 = vmul.f32 %v885, %v1233
        %v1259 = vmul.f32 %v886, %v1233
        %v1260 = vmul.f32 %v887, %v1233
        %v1261 = vmul.f32 %v888, %v1233
        %v1262 = vmul.f32 %v889, %v1233
        %v1263 = vmul.f32 %v890, %v1233
        %v1264 = vmul.f32 %v891, %v1233
        %v1265 = vmul.f32 %v892, %v1233
        %v1266 = vmul.f32 %v893, %v1233
        %v1267 = vmul.f32 %v894, %v1233
        %v1268 = vmul.f32 %v895, %v1233
        %v1269 = vmul.f32 %v896, %v1233
        %v1270 = vmul.f32 %v897, %v1233
        %v1271 = vmul.f32 %v898, %v1233
        %v1272 = vmul.f32 %v899, %v1233
        %v1273 = vmul.f32 %v900, %v1233
        %v1274 = vmul.f32 %v901, %v1233
        %v1275 = vmul.f32 %v902, %v1233
        %v1276 = vmul.f32 %v903, %v1233
        %v1277 = vmul.f32 %v904, %v1233
        %v1278 = vmul.f32 %v905, %v1233
        %v1279 = vmul.f32 %v906, %v1233
        %v1280 = vmul.f32 %v907, %v1233
        %v1281 = vmul.f32 %v908, %v1233
        %vm1330 = vcmask 1045504
        %v1331 = vrot.slane %v1234, 2
        %v1332 = vrot.slane %v1235, 2
        %v1333 = vsel %vm1330, %v1331, %v1332
        %v1334 = vrot.slane %v1236, 2
        %v1335 = vsel %vm1330, %v1332, %v1334
        %v1336 = vrot.slane %v1237, 2
        %v1337 = vrot.slane %v1238, 2
        %v1338 = vsel %vm1330, %v1336, %v1337
        %v1339 = vrot.slane %v1239, 2
        %v1340 = vsel %vm1330, %v1337, %v1339
        %v1341 = vrot.slane %v1240, 2
        %v1342 = vrot.slane %v1241, 2
        %v1343 = vsel %vm1330, %v1341, %v1342
        %v1344 = vrot.slane %v1242, 2
        %v1345 = vsel %vm1330, %v1342, %v1344
        %v1346 = vrot.slane %v1243, 2
        %v1347 = vrot.slane %v1244, 2
        %v1348 = vsel %vm1330, %v1346, %v1347
        %v1349 = vrot.slane %v1245, 2
        %v1350 = vsel %vm1330, %v1347, %v1349
        %v1351 = vrot.slane %v1246, 2
        %v1352 = vrot.slane %v1247, 2
        %v1353 = vsel %vm1330, %v1351, %v1352
        %v1354 = vrot.slane %v1248, 2
        %v1355 = vsel %vm1330, %v1352, %v1354
        %v1356 = vrot.slane %v1249, 2
        %v1357 = vrot.slane %v1250, 2
        %v1358 = vsel %vm1330, %v1356, %v1357
        %v1359 = vrot.slane %v1251, 2
        %v1360 = vsel %vm1330, %v1357, %v1359
        %v1361 = vrot.slane %v1252, 2
        %v1362 = vrot.slane %v1253, 2
        %v1363 = vsel %vm1330, %v1361, %v1362
        %v1364 = vrot.slane %v1254, 2
        %v1365 = vsel %vm1330, %v1362, %v1364
        %v1366 = vrot.slane %v1255, 2
        %v1367 = vrot.slane %v1256, 2
        %v1368 = vsel %vm1330, %v1366, %v1367
        %v1369 = vrot.slane %v1257, 2
        %v1370 = vsel %vm1330, %v1367, %v1369
        %v1371 = vrot.slane %v1258, 2
        %v1372 = vrot.slane %v1259, 2
        %v1373 = vsel %vm1330, %v1371, %v1372
        %v1374 = vrot.slane %v1260, 2
        %v1375 = vsel %vm1330, %v1372, %v1374
        %v1376 = vrot.slane %v1261, 2
        %v1377 = vrot.slane %v1262, 2
        %v1378 = vsel %vm1330, %v1376, %v1377
        %v1379 = vrot.slane %v1263, 2
        %v1380 = vsel %vm1330, %v1377, %v1379
        %v1381 = vrot.slane %v1264, 2
        %v1382 = vrot.slane %v1265, 2
        %v1383 = vsel %vm1330, %v1381, %v1382
        %v1384 = vrot.slane %v1266, 2
        %v1385 = vsel %vm1330, %v1382, %v1384
        %v1386 = vrot.slane %v1267, 2
        %v1387 = vrot.slane %v1268, 2
        %v1388 = vsel %vm1330, %v1386, %v1387
        %v1389 = vrot.slane %v1269, 2
        %v1390 = vsel %vm1330, %v1387, %v1389
        %v1391 = vrot.slane %v1270, 2
        %v1392 = vrot.slane %v1271, 2
        %v1393 = vsel %vm1330, %v1391, %v1392
        %v1394 = vrot.slane %v1272, 2
        %v1395 = vsel %vm1330, %v1392, %v1394
        %v1396 = vrot.slane %v1273, 2
        %v1397 = vrot.slane %v1274, 2
        %v1398 = vsel %vm1330, %v1396, %v1397
        %v1399 = vrot.slane %v1275, 2
        %v1400 = vsel %vm1330, %v1397, %v1399
        %v1401 = vrot.slane %v1276, 2
        %v1402 = vrot.slane %v1277, 2
        %v1403 = vsel %vm1330, %v1401, %v1402
        %v1404 = vrot.slane %v1278, 2
        %v1405 = vsel %vm1330, %v1402, %v1404
        %v1406 = vrot.slane %v1279, 2
        %v1407 = vrot.slane %v1280, 2
        %v1408 = vsel %vm1330, %v1406, %v1407
        %v1409 = vrot.slane %v1281, 2
        %v1410 = vsel %vm1330, %v1407, %v1409
        %v1443 = vadd.f32 %v1198, %v1333
        %v1444 = vadd.f32 %v1199, %v1335
        %v1445 = vadd.f32 %v1200, %v1338
        %v1446 = vadd.f32 %v1201, %v1340
        %v1447 = vadd.f32 %v1202, %v1343
        %v1448 = vadd.f32 %v1203, %v1345
        %v1449 = vadd.f32 %v1204, %v1348
        %v1450 = vadd.f32 %v1205, %v1350
        %v1451 = vadd.f32 %v1206, %v1353
        %v1452 = vadd.f32 %v1207, %v1355
        %v1453 = vadd.f32 %v1208, %v1358
        %v1454 = vadd.f32 %v1209, %v1360
        %v1455 = vadd.f32 %v1210, %v1363
        %v1456 = vadd.f32 %v1211, %v1365
        %v1457 = vadd.f32 %v1212, %v1368
        %v1458 = vadd.f32 %v1213, %v1370
        %v1459 = vadd.f32 %v1214, %v1373
        %v1460 = vadd.f32 %v1215, %v1375
        %v1461 = vadd.f32 %v1216, %v1378
        %v1462 = vadd.f32 %v1217, %v1380
        %v1463 = vadd.f32 %v1218, %v1383
        %v1464 = vadd.f32 %v1219, %v1385
        %v1465 = vadd.f32 %v1220, %v1388
        %v1466 = vadd.f32 %v1221, %v1390
        %v1467 = vadd.f32 %v1222, %v1393
        %v1468 = vadd.f32 %v1223, %v1395
        %v1469 = vadd.f32 %v1224, %v1398
        %v1470 = vadd.f32 %v1225, %v1400
        %v1471 = vadd.f32 %v1226, %v1403
        %v1472 = vadd.f32 %v1227, %v1405
        %v1473 = vadd.f32 %v1228, %v1408
        %v1474 = vadd.f32 %v1229, %v1410
        %v1475 = vlaneseq
        %v1476 = vshrl.u32 %v1475, 7
        %v1477 = vsub.s32 3, %v1476
        %v1478 = vrot.slane %v915, %v1477
        %v1479 = vmul.f32 %v864, %v1478
        %v1480 = vmul.f32 %v865, %v1478
        %v1481 = vmul.f32 %v867, %v1478
        %v1482 = vmul.f32 %v868, %v1478
        %v1483 = vmul.f32 %v870, %v1478
        %v1484 = vmul.f32 %v871, %v1478
        %v1485 = vmul.f32 %v873, %v1478
        %v1486 = vmul.f32 %v874, %v1478
        %v1487 = vmul.f32 %v876, %v1478
        %v1488 = vmul.f32 %v877, %v1478
        %v1489 = vmul.f32 %v879, %v1478
        %v1490 = vmul.f32 %v880, %v1478
        %v1491 = vmul.f32 %v882, %v1478
        %v1492 = vmul.f32 %v883, %v1478
        %v1493 = vmul.f32 %v885, %v1478
        %v1494 = vmul.f32 %v886, %v1478
        %v1495 = vmul.f32 %v888, %v1478
        %v1496 = vmul.f32 %v889, %v1478
        %v1497 = vmul.f32 %v891, %v1478
        %v1498 = vmul.f32 %v892, %v1478
        %v1499 = vmul.f32 %v894, %v1478
        %v1500 = vmul.f32 %v895, %v1478
        %v1501 = vmul.f32 %v897, %v1478
        %v1502 = vmul.f32 %v898, %v1478
        %v1503 = vmul.f32 %v900, %v1478
        %v1504 = vmul.f32 %v901, %v1478
        %v1505 = vmul.f32 %v903, %v1478
        %v1506 = vmul.f32 %v904, %v1478
        %v1507 = vmul.f32 %v906, %v1478
        %v1508 = vmul.f32 %v907, %v1478
        %v1509 = vmul.f32 %v909, %v1478
        %v1510 = vmul.f32 %v910, %v1478
        %v1511 = vadd.f32 %v1443, %v1479
        %v1512 = vadd.f32 %v1444, %v1480
        %v1513 = vadd.f32 %v1445, %v1481
        %v1514 = vadd.f32 %v1446, %v1482
        %v1515 = vadd.f32 %v1447, %v1483
        %v1516 = vadd.f32 %v1448, %v1484
        %v1517 = vadd.f32 %v1449, %v1485
        %v1518 = vadd.f32 %v1450, %v1486
        %v1519 = vadd.f32 %v1451, %v1487
        %v1520 = vadd.f32 %v1452, %v1488
        %v1521 = vadd.f32 %v1453, %v1489
        %v1522 = vadd.f32 %v1454, %v1490
        %v1523 = vadd.f32 %v1455, %v1491
        %v1524 = vadd.f32 %v1456, %v1492
        %v1525 = vadd.f32 %v1457, %v1493
        %v1526 = vadd.f32 %v1458, %v1494
        %v1527 = vadd.f32 %v1459, %v1495
        %v1528 = vadd.f32 %v1460, %v1496
        %v1529 = vadd.f32 %v1461, %v1497
        %v1530 = vadd.f32 %v1462, %v1498
        %v1531 = vadd.f32 %v1463, %v1499
        %v1532 = vadd.f32 %v1464, %v1500
        %v1533 = vadd.f32 %v1465, %v1501
        %v1534 = vadd.f32 %v1466, %v1502
        %v1535 = vadd.f32 %v1467, %v1503
        %v1536 = vadd.f32 %v1468, %v1504
        %v1537 = vadd.f32 %v1469, %v1505
        %v1538 = vadd.f32 %v1470, %v1506
        %v1539 = vadd.f32 %v1471, %v1507
        %v1540 = vadd.f32 %v1472, %v1508
        %v1541 = vadd.f32 %v1473, %v1509
        %v1542 = vadd.f32 %v1474, %v1510
        %v1543 = vlaneseq
        %v1544 = vshrl.u32 %v1543, 7
        %v1545 = vsub.s32 4, %v1544
        %v1546 = vrot.slane %v915, %v1545
        %v1547 = vmul.f32 %v864, %v1546
        %v1548 = vmul.f32 %v865, %v1546
        %v1549 = vmul.f32 %v866, %v1546
        %v1550 = vmul.f32 %v867, %v1546
        %v1551 = vmul.f32 %v868, %v1546
        %v1552 = vmul.f32 %v869, %v1546
        %v1553 = vmul.f32 %v870, %v1546
        %v1554 = vmul.f32 %v871, %v1546
        %v1555 = vmul.f32 %v872, %v1546
        %v1556 = vmul.f32 %v873, %v1546
        %v1557 = vmul.f32 %v874, %v1546
        %v1558 = vmul.f32 %v875, %v1546
        %v1559 = vmul.f32 %v876, %v1546
        %v1560 = vmul.f32 %v877, %v1546
        %v1561 = vmul.f32 %v878, %v1546
        %v1562 = vmul.f32 %v879, %v1546
        %v1563 = vmul.f32 %v880, %v1546
        %v1564 = vmul.f32 %v881, %v1546
        %v1565 = vmul.f32 %v882, %v1546
        %v1566 = vmul.f32 %v883, %v1546
        %v1567 = vmul.f32 %v884, %v1546
        %v1568 = vmul.f32 %v885, %v1546
        %v1569 = vmul.f32 %v886, %v1546
        %v1570 = vmul.f32 %v887, %v1546
        %v1571 = vmul.f32 %v888, %v1546
        %v1572 = vmul.f32 %v889, %v1546
        %v1573 = vmul.f32 %v890, %v1546
        %v1574 = vmul.f32 %v891, %v1546
        %v1575 = vmul.f32 %v892, %v1546
        %v1576 = vmul.f32 %v893, %v1546
        %v1577 = vmul.f32 %v894, %v1546
        %v1578 = vmul.f32 %v895, %v1546
        %v1579 = vmul.f32 %v896, %v1546
        %v1580 = vmul.f32 %v897, %v1546
        %v1581 = vmul.f32 %v898, %v1546
        %v1582 = vmul.f32 %v899, %v1546
        %v1583 = vmul.f32 %v900, %v1546
        %v1584 = vmul.f32 %v901, %v1546
        %v1585 = vmul.f32 %v902, %v1546
        %v1586 = vmul.f32 %v903, %v1546
        %v1587 = vmul.f32 %v904, %v1546
        %v1588 = vmul.f32 %v905, %v1546
        %v1589 = vmul.f32 %v906, %v1546
        %v1590 = vmul.f32 %v907, %v1546
        %v1591 = vmul.f32 %v908, %v1546
        %v1592 = vmul.f32 %v909, %v1546
        %v1593 = vmul.f32 %v910, %v1546
        %v1594 = vmul.f32 %v911, %v1546
        %v1643 = vrot.slane %v1547, 1
        %v1644 = vrot.slane %v1548, 1
        %v1645 = vsel %vm1085, %v1643, %v1644
        %v1646 = vrot.slane %v1549, 1
        %v1647 = vsel %vm1085, %v1644, %v1646
        %v1648 = vrot.slane %v1550, 1
        %v1649 = vrot.slane %v1551, 1
        %v1650 = vsel %vm1085, %v1648, %v1649
        %v1651 = vrot.slane %v1552, 1
        %v1652 = vsel %vm1085, %v1649, %v1651
        %v1653 = vrot.slane %v1553, 1
        %v1654 = vrot.slane %v1554, 1
        %v1655 = vsel %vm1085, %v1653, %v1654
        %v1656 = vrot.slane %v1555, 1
        %v1657 = vsel %vm1085, %v1654, %v1656
        %v1658 = vrot.slane %v1556, 1
        %v1659 = vrot.slane %v1557, 1
        %v1660 = vsel %vm1085, %v1658, %v1659
        %v1661 = vrot.slane %v1558, 1
        %v1662 = vsel %vm1085, %v1659, %v1661
        %v1663 = vrot.slane %v1559, 1
        %v1664 = vrot.slane %v1560, 1
        %v1665 = vsel %vm1085, %v1663, %v1664
        %v1666 = vrot.slane %v1561, 1
        %v1667 = vsel %vm1085, %v1664, %v1666
        %v1668 = vrot.slane %v1562, 1
        %v1669 = vrot.slane %v1563, 1
        %v1670 = vsel %vm1085, %v1668, %v1669
        %v1671 = vrot.slane %v1564, 1
        %v1672 = vsel %vm1085, %v1669, %v1671
        %v1673 = vrot.slane %v1565, 1
        %v1674 = vrot.slane %v1566, 1
        %v1675 = vsel %vm1085, %v1673, %v1674
        %v1676 = vrot.slane %v1567, 1
        %v1677 = vsel %vm1085, %v1674, %v1676
        %v1678 = vrot.slane %v1568, 1
        %v1679 = vrot.slane %v1569, 1
        %v1680 = vsel %vm1085, %v1678, %v1679
        %v1681 = vrot.slane %v1570, 1
        %v1682 = vsel %vm1085, %v1679, %v1681
        %v1683 = vrot.slane %v1571, 1
        %v1684 = vrot.slane %v1572, 1
        %v1685 = vsel %vm1085, %v1683, %v1684
        %v1686 = vrot.slane %v1573, 1
        %v1687 = vsel %vm1085, %v1684, %v1686
        %v1688 = vrot.slane %v1574, 1
        %v1689 = vrot.slane %v1575, 1
        %v1690 = vsel %vm1085, %v1688, %v1689
        %v1691 = vrot.slane %v1576, 1
        %v1692 = vsel %vm1085, %v1689, %v1691
        %v1693 = vrot.slane %v1577, 1
        %v1694 = vrot.slane %v1578, 1
        %v1695 = vsel %vm1085, %v1693, %v1694
        %v1696 = vrot.slane %v1579, 1
        %v1697 = vsel %vm1085, %v1694, %v1696
        %v1698 = vrot.slane %v1580, 1
        %v1699 = vrot.slane %v1581, 1
        %v1700 = vsel %vm1085, %v1698, %v1699
        %v1701 = vrot.slane %v1582, 1
        %v1702 = vsel %vm1085, %v1699, %v1701
        %v1703 = vrot.slane %v1583, 1
        %v1704 = vrot.slane %v1584, 1
        %v1705 = vsel %vm1085, %v1703, %v1704
        %v1706 = vrot.slane %v1585, 1
        %v1707 = vsel %vm1085, %v1704, %v1706
        %v1708 = vrot.slane %v1586, 1
        %v1709 = vrot.slane %v1587, 1
        %v1710 = vsel %vm1085, %v1708, %v1709
        %v1711 = vrot.slane %v1588, 1
        %v1712 = vsel %vm1085, %v1709, %v1711
        %v1713 = vrot.slane %v1589, 1
        %v1714 = vrot.slane %v1590, 1
        %v1715 = vsel %vm1085, %v1713, %v1714
        %v1716 = vrot.slane %v1591, 1
        %v1717 = vsel %vm1085, %v1714, %v1716
        %v1718 = vrot.slane %v1592, 1
        %v1719 = vrot.slane %v1593, 1
        %v1720 = vsel %vm1085, %v1718, %v1719
        %v1721 = vrot.slane %v1594, 1
        %v1722 = vsel %vm1085, %v1719, %v1721
        %v1755 = vadd.f32 %v1511, %v1645
        %v1756 = vadd.f32 %v1512, %v1647
        %v1757 = vadd.f32 %v1513, %v1650
        %v1758 = vadd.f32 %v1514, %v1652
        %v1759 = vadd.f32 %v1515, %v1655
        %v1760 = vadd.f32 %v1516, %v1657
        %v1761 = vadd.f32 %v1517, %v1660
        %v1762 = vadd.f32 %v1518, %v1662
        %v1763 = vadd.f32 %v1519, %v1665
        %v1764 = vadd.f32 %v1520, %v1667
        %v1765 = vadd.f32 %v1521, %v1670
        %v1766 = vadd.f32 %v1522, %v1672
        %v1767 = vadd.f32 %v1523, %v1675
        %v1768 = vadd.f32 %v1524, %v1677
        %v1769 = vadd.f32 %v1525, %v1680
        %v1770 = vadd.f32 %v1526, %v1682
        %v1771 = vadd.f32 %v1527, %v1685
        %v1772 = vadd.f32 %v1528, %v1687
        %v1773 = vadd.f32 %v1529, %v1690
        %v1774 = vadd.f32 %v1530, %v1692
        %v1775 = vadd.f32 %v1531, %v1695
        %v1776 = vadd.f32 %v1532, %v1697
        %v1777 = vadd.f32 %v1533, %v1700
        %v1778 = vadd.f32 %v1534, %v1702
        %v1779 = vadd.f32 %v1535, %v1705
        %v1780 = vadd.f32 %v1536, %v1707
        %v1781 = vadd.f32 %v1537, %v1710
        %v1782 = vadd.f32 %v1538, %v1712
        %v1783 = vadd.f32 %v1539, %v1715
        %v1784 = vadd.f32 %v1540, %v1717
        %v1785 = vadd.f32 %v1541, %v1720
        %v1786 = vadd.f32 %v1542, %v1722
        %v1787 = vlaneseq
        %v1788 = vshrl.u32 %v1787, 7
        %v1789 = vsub.s32 5, %v1788
        %v1790 = vrot.slane %v915, %v1789
        %v1791 = vmul.f32 %v864, %v1790
        %v1792 = vmul.f32 %v865, %v1790
        %v1793 = vmul.f32 %v866, %v1790
        %v1794 = vmul.f32 %v867, %v1790
        %v1795 = vmul.f32 %v868, %v1790
        %v1796 = vmul.f32 %v869, %v1790
        %v1797 = vmul.f32 %v870, %v1790
        %v1798 = vmul.f32 %v871, %v1790
        %v1799 = vmul.f32 %v872, %v1790
        %v1800 = vmul.f32 %v873, %v1790
        %v1801 = vmul.f32 %v874, %v1790
        %v1802 = vmul.f32 %v875, %v1790
        %v1803 = vmul.f32 %v876, %v1790
        %v1804 = vmul.f32 %v877, %v1790
        %v1805 = vmul.f32 %v878, %v1790
        %v1806 = vmul.f32 %v879, %v1790
        %v1807 = vmul.f32 %v880, %v1790
        %v1808 = vmul.f32 %v881, %v1790
        %v1809 = vmul.f32 %v882, %v1790
        %v1810 = vmul.f32 %v883, %v1790
        %v1811 = vmul.f32 %v884, %v1790
        %v1812 = vmul.f32 %v885, %v1790
        %v1813 = vmul.f32 %v886, %v1790
        %v1814 = vmul.f32 %v887, %v1790
        %v1815 = vmul.f32 %v888, %v1790
        %v1816 = vmul.f32 %v889, %v1790
        %v1817 = vmul.f32 %v890, %v1790
        %v1818 = vmul.f32 %v891, %v1790
        %v1819 = vmul.f32 %v892, %v1790
        %v1820 = vmul.f32 %v893, %v1790
        %v1821 = vmul.f32 %v894, %v1790
        %v1822 = vmul.f32 %v895, %v1790
        %v1823 = vmul.f32 %v896, %v1790
        %v1824 = vmul.f32 %v897, %v1790
        %v1825 = vmul.f32 %v898, %v1790
        %v1826 = vmul.f32 %v899, %v1790
        %v1827 = vmul.f32 %v900, %v1790
        %v1828 = vmul.f32 %v901, %v1790
        %v1829 = vmul.f32 %v902, %v1790
        %v1830 = vmul.f32 %v903, %v1790
        %v1831 = vmul.f32 %v904, %v1790
        %v1832 = vmul.f32 %v905, %v1790
        %v1833 = vmul.f32 %v906, %v1790
        %v1834 = vmul.f32 %v907, %v1790
        %v1835 = vmul.f32 %v908, %v1790
        %v1836 = vmul.f32 %v909, %v1790
        %v1837 = vmul.f32 %v910, %v1790
        %v1838 = vmul.f32 %v911, %v1790
        %v1887 = vrot.slane %v1791, 2
        %v1888 = vrot.slane %v1792, 2
        %v1889 = vsel %vm1330, %v1887, %v1888
        %v1890 = vrot.slane %v1793, 2
        %v1891 = vsel %vm1330, %v1888, %v1890
        %v1892 = vrot.slane %v1794, 2
        %v1893 = vrot.slane %v1795, 2
        %v1894 = vsel %vm1330, %v1892, %v1893
        %v1895 = vrot.slane %v1796, 2
        %v1896 = vsel %vm1330, %v1893, %v1895
        %v1897 = vrot.slane %v1797, 2
        %v1898 = vrot.slane %v1798, 2
        %v1899 = vsel %vm1330, %v1897, %v1898
        %v1900 = vrot.slane %v1799, 2
        %v1901 = vsel %vm1330, %v1898, %v1900
        %v1902 = vrot.slane %v1800, 2
        %v1903 = vrot.slane %v1801, 2
        %v1904 = vsel %vm1330, %v1902, %v1903
        %v1905 = vrot.slane %v1802, 2
        %v1906 = vsel %vm1330, %v1903, %v1905
        %v1907 = vrot.slane %v1803, 2
        %v1908 = vrot.slane %v1804, 2
        %v1909 = vsel %vm1330, %v1907, %v1908
        %v1910 = vrot.slane %v1805, 2
        %v1911 = vsel %vm1330, %v1908, %v1910
        %v1912 = vrot.slane %v1806, 2
        %v1913 = vrot.slane %v1807, 2
        %v1914 = vsel %vm1330, %v1912, %v1913
        %v1915 = vrot.slane %v1808, 2
        %v1916 = vsel %vm1330, %v1913, %v1915
        %v1917 = vrot.slane %v1809, 2
        %v1918 = vrot.slane %v1810, 2
        %v1919 = vsel %vm1330, %v1917, %v1918
        %v1920 = vrot.slane %v1811, 2
        %v1921 = vsel %vm1330, %v1918, %v1920
        %v1922 = vrot.slane %v1812, 2
        %v1923 = vrot.slane %v1813, 2
        %v1924 = vsel %vm1330, %v1922, %v1923
        %v1925 = vrot.slane %v1814, 2
        %v1926 = vsel %vm1330, %v1923, %v1925
        %v1927 = vrot.slane %v1815, 2
        %v1928 = vrot.slane %v1816, 2
        %v1929 = vsel %vm1330, %v1927, %v1928
        %v1930 = vrot.slane %v1817, 2
        %v1931 = vsel %vm1330, %v1928, %v1930
        %v1932 = vrot.slane %v1818, 2
        %v1933 = vrot.slane %v1819, 2
        %v1934 = vsel %vm1330, %v1932, %v1933
        %v1935 = vrot.slane %v1820, 2
        %v1936 = vsel %vm1330, %v1933, %v1935
        %v1937 = vrot.slane %v1821, 2
        %v1938 = vrot.slane %v1822, 2
        %v1939 = vsel %vm1330, %v1937, %v1938
        %v1940 = vrot.slane %v1823, 2
        %v1941 = vsel %vm1330, %v1938, %v1940
        %v1942 = vrot.slane %v1824, 2
        %v1943 = vrot.slane %v1825, 2
        %v1944 = vsel %vm1330, %v1942, %v1943
        %v1945 = vrot.slane %v1826, 2
        %v1946 = vsel %vm1330, %v1943, %v1945
        %v1947 = vrot.slane %v1827, 2
        %v1948 = vrot.slane %v1828, 2
        %v1949 = vsel %vm1330, %v1947, %v1948
        %v1950 = vrot.slane %v1829, 2
        %v1951 = vsel %vm1330, %v1948, %v1950
        %v1952 = vrot.slane %v1830, 2
        %v1953 = vrot.slane %v1831, 2
        %v1954 = vsel %vm1330, %v1952, %v1953
        %v1955 = vrot.slane %v1832, 2
        %v1956 = vsel %vm1330, %v1953, %v1955
        %v1957 = vrot.slane %v1833, 2
        %v1958 = vrot.slane %v1834, 2
        %v1959 = vsel %vm1330, %v1957, %v1958
        %v1960 = vrot.slane %v1835, 2
        %v1961 = vsel %vm1330, %v1958, %v1960
        %v1962 = vrot.slane %v1836, 2
        %v1963 = vrot.slane %v1837, 2
        %v1964 = vsel %vm1330, %v1962, %v1963
        %v1965 = vrot.slane %v1838, 2
        %v1966 = vsel %vm1330, %v1963, %v1965
        %v1999 = vadd.f32 %v1755, %v1889
        %v2000 = vadd.f32 %v1756, %v1891
        %v2001 = vadd.f32 %v1757, %v1894
        %v2002 = vadd.f32 %v1758, %v1896
        %v2003 = vadd.f32 %v1759, %v1899
        %v2004 = vadd.f32 %v1760, %v1901
        %v2005 = vadd.f32 %v1761, %v1904
        %v2006 = vadd.f32 %v1762, %v1906
        %v2007 = vadd.f32 %v1763, %v1909
        %v2008 = vadd.f32 %v1764, %v1911
        %v2009 = vadd.f32 %v1765, %v1914
        %v2010 = vadd.f32 %v1766, %v1916
        %v2011 = vadd.f32 %v1767, %v1919
        %v2012 = vadd.f32 %v1768, %v1921
        %v2013 = vadd.f32 %v1769, %v1924
        %v2014 = vadd.f32 %v1770, %v1926
        %v2015 = vadd.f32 %v1771, %v1929
        %v2016 = vadd.f32 %v1772, %v1931
        %v2017 = vadd.f32 %v1773, %v1934
        %v2018 = vadd.f32 %v1774, %v1936
        %v2019 = vadd.f32 %v1775, %v1939
        %v2020 = vadd.f32 %v1776, %v1941
        %v2021 = vadd.f32 %v1777, %v1944
        %v2022 = vadd.f32 %v1778, %v1946
        %v2023 = vadd.f32 %v1779, %v1949
        %v2024 = vadd.f32 %v1780, %v1951
        %v2025 = vadd.f32 %v1781, %v1954
        %v2026 = vadd.f32 %v1782, %v1956
        %v2027 = vadd.f32 %v1783, %v1959
        %v2028 = vadd.f32 %v1784, %v1961
        %v2029 = vadd.f32 %v1785, %v1964
        %v2030 = vadd.f32 %v1786, %v1966
        %v2031 = vlaneseq
        %v2032 = vshrl.u32 %v2031, 7
        %v2033 = vsub.s32 6, %v2032
        %v2034 = vrot.slane %v915, %v2033
        %v2035 = vmul.f32 %v867, %v2034
        %v2036 = vmul.f32 %v868, %v2034
        %v2037 = vmul.f32 %v870, %v2034
        %v2038 = vmul.f32 %v871, %v2034
        %v2039 = vmul.f32 %v873, %v2034
        %v2040 = vmul.f32 %v874, %v2034
        %v2041 = vmul.f32 %v876, %v2034
        %v2042 = vmul.f32 %v877, %v2034
        %v2043 = vmul.f32 %v879, %v2034
        %v2044 = vmul.f32 %v880, %v2034
        %v2045 = vmul.f32 %v882, %v2034
        %v2046 = vmul.f32 %v883, %v2034
        %v2047 = vmul.f32 %v885, %v2034
        %v2048 = vmul.f32 %v886, %v2034
        %v2049 = vmul.f32 %v888, %v2034
        %v2050 = vmul.f32 %v889, %v2034
        %v2051 = vmul.f32 %v891, %v2034
        %v2052 = vmul.f32 %v892, %v2034
        %v2053 = vmul.f32 %v894, %v2034
        %v2054 = vmul.f32 %v895, %v2034
        %v2055 = vmul.f32 %v897, %v2034
        %v2056 = vmul.f32 %v898, %v2034
        %v2057 = vmul.f32 %v900, %v2034
        %v2058 = vmul.f32 %v901, %v2034
        %v2059 = vmul.f32 %v903, %v2034
        %v2060 = vmul.f32 %v904, %v2034
        %v2061 = vmul.f32 %v906, %v2034
        %v2062 = vmul.f32 %v907, %v2034
        %v2063 = vmul.f32 %v909, %v2034
        %v2064 = vmul.f32 %v910, %v2034
        %v2065 = vmul.f32 %v912, %v2034
        %v2066 = vmul.f32 %v913, %v2034
        %v2067 = vadd.f32 %v1999, %v2035
        %v2068 = vadd.f32 %v2000, %v2036
        %v2069 = vadd.f32 %v2001, %v2037
        %v2070 = vadd.f32 %v2002, %v2038
        %v2071 = vadd.f32 %v2003, %v2039
        %v2072 = vadd.f32 %v2004, %v2040
        %v2073 = vadd.f32 %v2005, %v2041
        %v2074 = vadd.f32 %v2006, %v2042
        %v2075 = vadd.f32 %v2007, %v2043
        %v2076 = vadd.f32 %v2008, %v2044
        %v2077 = vadd.f32 %v2009, %v2045
        %v2078 = vadd.f32 %v2010, %v2046
        %v2079 = vadd.f32 %v2011, %v2047
        %v2080 = vadd.f32 %v2012, %v2048
        %v2081 = vadd.f32 %v2013, %v2049
        %v2082 = vadd.f32 %v2014, %v2050
        %v2083 = vadd.f32 %v2015, %v2051
        %v2084 = vadd.f32 %v2016, %v2052
        %v2085 = vadd.f32 %v2017, %v2053
        %v2086 = vadd.f32 %v2018, %v2054
        %v2087 = vadd.f32 %v2019, %v2055
        %v2088 = vadd.f32 %v2020, %v2056
        %v2089 = vadd.f32 %v2021, %v2057
        %v2090 = vadd.f32 %v2022, %v2058
        %v2091 = vadd.f32 %v2023, %v2059
        %v2092 = vadd.f32 %v2024, %v2060
        %v2093 = vadd.f32 %v2025, %v2061
        %v2094 = vadd.f32 %v2026, %v2062
        %v2095 = vadd.f32 %v2027, %v2063
        %v2096 = vadd.f32 %v2028, %v2064
        %v2097 = vadd.f32 %v2029, %v2065
        %v2098 = vadd.f32 %v2030, %v2066
        %v2099 = vlaneseq
        %v2100 = vshrl.u32 %v2099, 7
        %v2101 = vsub.s32 7, %v2100
        %v2102 = vrot.slane %v915, %v2101
        %v2103 = vmul.f32 %v867, %v2102
        %v2104 = vmul.f32 %v868, %v2102
        %v2105 = vmul.f32 %v869, %v2102
        %v2106 = vmul.f32 %v870, %v2102
        %v2107 = vmul.f32 %v871, %v2102
        %v2108 = vmul.f32 %v872, %v2102
        %v2109 = vmul.f32 %v873, %v2102
        %v2110 = vmul.f32 %v874, %v2102
        %v2111 = vmul.f32 %v875, %v2102
        %v2112 = vmul.f32 %v876, %v2102
        %v2113 = vmul.f32 %v877, %v2102
        %v2114 = vmul.f32 %v878, %v2102
        %v2115 = vmul.f32 %v879, %v2102
        %v2116 = vmul.f32 %v880, %v2102
        %v2117 = vmul.f32 %v881, %v2102
        %v2118 = vmul.f32 %v882, %v2102
        %v2119 = vmul.f32 %v883, %v2102
        %v2120 = vmul.f32 %v884, %v2102
        %v2121 = vmul.f32 %v885, %v2102
        %v2122 = vmul.f32 %v886, %v2102
        %v2123 = vmul.f32 %v887, %v2102
        %v2124 = vmul.f32 %v888, %v2102
        %v2125 = vmul.f32 %v889, %v2102
        %v2126 = vmul.f32 %v890, %v2102
        %v2127 = vmul.f32 %v891, %v2102
        %v2128 = vmul.f32 %v892, %v2102
        %v2129 = vmul.f32 %v893, %v2102
        %v2130 = vmul.f32 %v894, %v2102
        %v2131 = vmul.f32 %v895, %v2102
        %v2132 = vmul.f32 %v896, %v2102
        %v2133 = vmul.f32 %v897, %v2102
        %v2134 = vmul.f32 %v898, %v2102
        %v2135 = vmul.f32 %v899, %v2102
        %v2136 = vmul.f32 %v900, %v2102
        %v2137 = vmul.f32 %v901, %v2102
        %v2138 = vmul.f32 %v902, %v2102
        %v2139 = vmul.f32 %v903, %v2102
        %v2140 = vmul.f32 %v904, %v2102
        %v2141 = vmul.f32 %v905, %v2102
        %v2142 = vmul.f32 %v906, %v2102
        %v2143 = vmul.f32 %v907, %v2102
        %v2144 = vmul.f32 %v908, %v2102
        %v2145 = vmul.f32 %v909, %v2102
        %v2146 = vmul.f32 %v910, %v2102
        %v2147 = vmul.f32 %v911, %v2102
        %v2148 = vmul.f32 %v912, %v2102
        %v2149 = vmul.f32 %v913, %v2102
        %v2150 = vmul.f32 %v914, %v2102
        %v2199 = vrot.slane %v2103, 1
        %v2200 = vrot.slane %v2104, 1
        %v2201 = vsel %vm1085, %v2199, %v2200
        %v2202 = vrot.slane %v2105, 1
        %v2203 = vsel %vm1085, %v2200, %v2202
        %v2204 = vrot.slane %v2106, 1
        %v2205 = vrot.slane %v2107, 1
        %v2206 = vsel %vm1085, %v2204, %v2205
        %v2207 = vrot.slane %v2108, 1
        %v2208 = vsel %vm1085, %v2205, %v2207
        %v2209 = vrot.slane %v2109, 1
        %v2210 = vrot.slane %v2110, 1
        %v2211 = vsel %vm1085, %v2209, %v2210
        %v2212 = vrot.slane %v2111, 1
        %v2213 = vsel %vm1085, %v2210, %v2212
        %v2214 = vrot.slane %v2112, 1
        %v2215 = vrot.slane %v2113, 1
        %v2216 = vsel %vm1085, %v2214, %v2215
        %v2217 = vrot.slane %v2114, 1
        %v2218 = vsel %vm1085, %v2215, %v2217
        %v2219 = vrot.slane %v2115, 1
        %v2220 = vrot.slane %v2116, 1
        %v2221 = vsel %vm1085, %v2219, %v2220
        %v2222 = vrot.slane %v2117, 1
        %v2223 = vsel %vm1085, %v2220, %v2222
        %v2224 = vrot.slane %v2118, 1
        %v2225 = vrot.slane %v2119, 1
        %v2226 = vsel %vm1085, %v2224, %v2225
        %v2227 = vrot.slane %v2120, 1
        %v2228 = vsel %vm1085, %v2225, %v2227
        %v2229 = vrot.slane %v2121, 1
        %v2230 = vrot.slane %v2122, 1
        %v2231 = vsel %vm1085, %v2229, %v2230
        %v2232 = vrot.slane %v2123, 1
        %v2233 = vsel %vm1085, %v2230, %v2232
        %v2234 = vrot.slane %v2124, 1
        %v2235 = vrot.slane %v2125, 1
        %v2236 = vsel %vm1085, %v2234, %v2235
        %v2237 = vrot.slane %v2126, 1
        %v2238 = vsel %vm1085, %v2235, %v2237
        %v2239 = vrot.slane %v2127, 1
        %v2240 = vrot.slane %v2128, 1
        %v2241 = vsel %vm1085, %v2239, %v2240
        %v2242 = vrot.slane %v2129, 1
        %v2243 = vsel %vm1085, %v2240, %v2242
        %v2244 = vrot.slane %v2130, 1
        %v2245 = vrot.slane %v2131, 1
        %v2246 = vsel %vm1085, %v2244, %v2245
        %v2247 = vrot.slane %v2132, 1
        %v2248 = vsel %vm1085, %v2245, %v2247
        %v2249 = vrot.slane %v2133, 1
        %v2250 = vrot.slane %v2134, 1
        %v2251 = vsel %vm1085, %v2249, %v2250
        %v2252 = vrot.slane %v2135, 1
        %v2253 = vsel %vm1085, %v2250, %v2252
        %v2254 = vrot.slane %v2136, 1
        %v2255 = vrot.slane %v2137, 1
        %v2256 = vsel %vm1085, %v2254, %v2255
        %v2257 = vrot.slane %v2138, 1
        %v2258 = vsel %vm1085, %v2255, %v2257
        %v2259 = vrot.slane %v2139, 1
        %v2260 = vrot.slane %v2140, 1
        %v2261 = vsel %vm1085, %v2259, %v2260
        %v2262 = vrot.slane %v2141, 1
        %v2263 = vsel %vm1085, %v2260, %v2262
        %v2264 = vrot.slane %v2142, 1
        %v2265 = vrot.slane %v2143, 1
        %v2266 = vsel %vm1085, %v2264, %v2265
        %v2267 = vrot.slane %v2144, 1
        %v2268 = vsel %vm1085, %v2265, %v2267
        %v2269 = vrot.slane %v2145, 1
        %v2270 = vrot.slane %v2146, 1
        %v2271 = vsel %vm1085, %v2269, %v2270
        %v2272 = vrot.slane %v2147, 1
        %v2273 = vsel %vm1085, %v2270, %v2272
        %v2274 = vrot.slane %v2148, 1
        %v2275 = vrot.slane %v2149, 1
        %v2276 = vsel %vm1085, %v2274, %v2275
        %v2277 = vrot.slane %v2150, 1
        %v2278 = vsel %vm1085, %v2275, %v2277
        %v2311 = vadd.f32 %v2067, %v2201
        %v2312 = vadd.f32 %v2068, %v2203
        %v2313 = vadd.f32 %v2069, %v2206
        %v2314 = vadd.f32 %v2070, %v2208
        %v2315 = vadd.f32 %v2071, %v2211
        %v2316 = vadd.f32 %v2072, %v2213
        %v2317 = vadd.f32 %v2073, %v2216
        %v2318 = vadd.f32 %v2074, %v2218
        %v2319 = vadd.f32 %v2075, %v2221
        %v2320 = vadd.f32 %v2076, %v2223
        %v2321 = vadd.f32 %v2077, %v2226
        %v2322 = vadd.f32 %v2078, %v2228
        %v2323 = vadd.f32 %v2079, %v2231
        %v2324 = vadd.f32 %v2080, %v2233
        %v2325 = vadd.f32 %v2081, %v2236
        %v2326 = vadd.f32 %v2082, %v2238
        %v2327 = vadd.f32 %v2083, %v2241
        %v2328 = vadd.f32 %v2084, %v2243
        %v2329 = vadd.f32 %v2085, %v2246
        %v2330 = vadd.f32 %v2086, %v2248
        %v2331 = vadd.f32 %v2087, %v2251
        %v2332 = vadd.f32 %v2088, %v2253
        %v2333 = vadd.f32 %v2089, %v2256
        %v2334 = vadd.f32 %v2090, %v2258
        %v2335 = vadd.f32 %v2091, %v2261
        %v2336 = vadd.f32 %v2092, %v2263
        %v2337 = vadd.f32 %v2093, %v2266
        %v2338 = vadd.f32 %v2094, %v2268
        %v2339 = vadd.f32 %v2095, %v2271
        %v2340 = vadd.f32 %v2096, %v2273
        %v2341 = vadd.f32 %v2097, %v2276
        %v2342 = vadd.f32 %v2098, %v2278
        %v2343 = vlaneseq
        %v2344 = vshrl.u32 %v2343, 7
        %v2345 = vsub.s32 0, %v2344
        %v2346 = vrot.slane %v916, %v2345
        %v2347 = vmul.f32 %v867, %v2346
        %v2348 = vmul.f32 %v868, %v2346
        %v2349 = vmul.f32 %v869, %v2346
        %v2350 = vmul.f32 %v870, %v2346
        %v2351 = vmul.f32 %v871, %v2346
        %v2352 = vmul.f32 %v872, %v2346
        %v2353 = vmul.f32 %v873, %v2346
        %v2354 = vmul.f32 %v874, %v2346
        %v2355 = vmul.f32 %v875, %v2346
        %v2356 = vmul.f32 %v876, %v2346
        %v2357 = vmul.f32 %v877, %v2346
        %v2358 = vmul.f32 %v878, %v2346
        %v2359 = vmul.f32 %v879, %v2346
        %v2360 = vmul.f32 %v880, %v2346
        %v2361 = vmul.f32 %v881, %v2346
        %v2362 = vmul.f32 %v882, %v2346
        %v2363 = vmul.f32 %v883, %v2346
        %v2364 = vmul.f32 %v884, %v2346
        %v2365 = vmul.f32 %v885, %v2346
        %v2366 = vmul.f32 %v886, %v2346
        %v2367 = vmul.f32 %v887, %v2346
        %v2368 = vmul.f32 %v888, %v2346
        %v2369 = vmul.f32 %v889, %v2346
        %v2370 = vmul.f32 %v890, %v2346
        %v2371 = vmul.f32 %v891, %v2346
        %v2372 = vmul.f32 %v892, %v2346
        %v2373 = vmul.f32 %v893, %v2346
        %v2374 = vmul.f32 %v894, %v2346
        %v2375 = vmul.f32 %v895, %v2346
        %v2376 = vmul.f32 %v896, %v2346
        %v2377 = vmul.f32 %v897, %v2346
        %v2378 = vmul.f32 %v898, %v2346
        %v2379 = vmul.f32 %v899, %v2346
        %v2380 = vmul.f32 %v900, %v2346
        %v2381 = vmul.f32 %v901, %v2346
        %v2382 = vmul.f32 %v902, %v2346
        %v2383 = vmul.f32 %v903, %v2346
        %v2384 = vmul.f32 %v904, %v2346
        %v2385 = vmul.f32 %v905, %v2346
        %v2386 = vmul.f32 %v906, %v2346
        %v2387 = vmul.f32 %v907, %v2346
        %v2388 = vmul.f32 %v908, %v2346
        %v2389 = vmul.f32 %v909, %v2346
        %v2390 = vmul.f32 %v910, %v2346
        %v2391 = vmul.f32 %v911, %v2346
        %v2392 = vmul.f32 %v912, %v2346
        %v2393 = vmul.f32 %v913, %v2346
        %v2394 = vmul.f32 %v914, %v2346
        %v2443 = vrot.slane %v2347, 2
        %v2444 = vrot.slane %v2348, 2
        %v2445 = vsel %vm1330, %v2443, %v2444
        %v2446 = vrot.slane %v2349, 2
        %v2447 = vsel %vm1330, %v2444, %v2446
        %v2448 = vrot.slane %v2350, 2
        %v2449 = vrot.slane %v2351, 2
        %v2450 = vsel %vm1330, %v2448, %v2449
        %v2451 = vrot.slane %v2352, 2
        %v2452 = vsel %vm1330, %v2449, %v2451
        %v2453 = vrot.slane %v2353, 2
        %v2454 = vrot.slane %v2354, 2
        %v2455 = vsel %vm1330, %v2453, %v2454
        %v2456 = vrot.slane %v2355, 2
        %v2457 = vsel %vm1330, %v2454, %v2456
        %v2458 = vrot.slane %v2356, 2
        %v2459 = vrot.slane %v2357, 2
        %v2460 = vsel %vm1330, %v2458, %v2459
        %v2461 = vrot.slane %v2358, 2
        %v2462 = vsel %vm1330, %v2459, %v2461
        %v2463 = vrot.slane %v2359, 2
        %v2464 = vrot.slane %v2360, 2
        %v2465 = vsel %vm1330, %v2463, %v2464
        %v2466 = vrot.slane %v2361, 2
        %v2467 = vsel %vm1330, %v2464, %v2466
        %v2468 = vrot.slane %v2362, 2
        %v2469 = vrot.slane %v2363, 2
        %v2470 = vsel %vm1330, %v2468, %v2469
        %v2471 = vrot.slane %v2364, 2
        %v2472 = vsel %vm1330, %v2469, %v2471
        %v2473 = vrot.slane %v2365, 2
        %v2474 = vrot.slane %v2366, 2
        %v2475 = vsel %vm1330, %v2473, %v2474
        %v2476 = vrot.slane %v2367, 2
        %v2477 = vsel %vm1330, %v2474, %v2476
        %v2478 = vrot.slane %v2368, 2
        %v2479 = vrot.slane %v2369, 2
        %v2480 = vsel %vm1330, %v2478, %v2479
        %v2481 = vrot.slane %v2370, 2
        %v2482 = vsel %vm1330, %v2479, %v2481
        %v2483 = vrot.slane %v2371, 2
        %v2484 = vrot.slane %v2372, 2
        %v2485 = vsel %vm1330, %v2483, %v2484
        %v2486 = vrot.slane %v2373, 2
        %v2487 = vsel %vm1330, %v2484, %v2486
        %v2488 = vrot.slane %v2374, 2
        %v2489 = vrot.slane %v2375, 2
        %v2490 = vsel %vm1330, %v2488, %v2489
        %v2491 = vrot.slane %v2376, 2
        %v2492 = vsel %vm1330, %v2489, %v2491
        %v2493 = vrot.slane %v2377, 2
        %v2494 = vrot.slane %v2378, 2
        %v2495 = vsel %vm1330, %v2493, %v2494
        %v2496 = vrot.slane %v2379, 2
        %v2497 = vsel %vm1330, %v2494, %v2496
        %v2498 = vrot.slane %v2380, 2
        %v2499 = vrot.slane %v2381, 2
        %v2500 = vsel %vm1330, %v2498, %v2499
        %v2501 = vrot.slane %v2382, 2
        %v2502 = vsel %vm1330, %v2499, %v2501
        %v2503 = vrot.slane %v2383, 2
        %v2504 = vrot.slane %v2384, 2
        %v2505 = vsel %vm1330, %v2503, %v2504
        %v2506 = vrot.slane %v2385, 2
        %v2507 = vsel %vm1330, %v2504, %v2506
        %v2508 = vrot.slane %v2386, 2
        %v2509 = vrot.slane %v2387, 2
        %v2510 = vsel %vm1330, %v2508, %v2509
        %v2511 = vrot.slane %v2388, 2
        %v2512 = vsel %vm1330, %v2509, %v2511
        %v2513 = vrot.slane %v2389, 2
        %v2514 = vrot.slane %v2390, 2
        %v2515 = vsel %vm1330, %v2513, %v2514
        %v2516 = vrot.slane %v2391, 2
        %v2517 = vsel %vm1330, %v2514, %v2516
        %v2518 = vrot.slane %v2392, 2
        %v2519 = vrot.slane %v2393, 2
        %v2520 = vsel %vm1330, %v2518, %v2519
        %v2521 = vrot.slane %v2394, 2
        %v2522 = vsel %vm1330, %v2519, %v2521
        %v2555 = vadd.f32 %v2311, %v2445
        %v2556 = vadd.f32 %v2312, %v2447
        %v2557 = vadd.f32 %v2313, %v2450
        %v2558 = vadd.f32 %v2314, %v2452
        %v2559 = vadd.f32 %v2315, %v2455
        %v2560 = vadd.f32 %v2316, %v2457
        %v2561 = vadd.f32 %v2317, %v2460
        %v2562 = vadd.f32 %v2318, %v2462
        %v2563 = vadd.f32 %v2319, %v2465
        %v2564 = vadd.f32 %v2320, %v2467
        %v2565 = vadd.f32 %v2321, %v2470
        %v2566 = vadd.f32 %v2322, %v2472
        %v2567 = vadd.f32 %v2323, %v2475
        %v2568 = vadd.f32 %v2324, %v2477
        %v2569 = vadd.f32 %v2325, %v2480
        %v2570 = vadd.f32 %v2326, %v2482
        %v2571 = vadd.f32 %v2327, %v2485
        %v2572 = vadd.f32 %v2328, %v2487
        %v2573 = vadd.f32 %v2329, %v2490
        %v2574 = vadd.f32 %v2330, %v2492
        %v2575 = vadd.f32 %v2331, %v2495
        %v2576 = vadd.f32 %v2332, %v2497
        %v2577 = vadd.f32 %v2333, %v2500
        %v2578 = vadd.f32 %v2334, %v2502
        %v2579 = vadd.f32 %v2335, %v2505
        %v2580 = vadd.f32 %v2336, %v2507
        %v2581 = vadd.f32 %v2337, %v2510
        %v2582 = vadd.f32 %v2338, %v2512
        %v2583 = vadd.f32 %v2339, %v2515
        %v2584 = vadd.f32 %v2340, %v2517
        %v2585 = vadd.f32 %v2341, %v2520
        %v2586 = vadd.f32 %v2342, %v2522
        %v2587 = vld [vmem:[#allocation11] sm:$0x3]
        %v2588 = vld [vmem:[#allocation14] sm:$0x1]
        %v2590 = vlaneseq
        %v2591 = vshrl.u32 %v2590, 7
        %v2592 = vsub.s32 0, %v2591
        %v2593 = vrot.slane %v2588, %v2592
        %v2596 = vsel %vm772, %v2555, 0
        %v2599 = vsel %vm772, %v2556, 0
        %v2602 = vsel %vm772, %v2557, 0
        %v2605 = vsel %vm772, %v2558, 0
        %v2608 = vsel %vm772, %v2559, 0
        %v2611 = vsel %vm772, %v2560, 0
        %v2614 = vsel %vm772, %v2561, 0
        %v2617 = vsel %vm772, %v2562, 0
        %v2620 = vsel %vm772, %v2563, 0
        %v2623 = vsel %vm772, %v2564, 0
        %v2626 = vsel %vm772, %v2565, 0
        %v2629 = vsel %vm772, %v2566, 0
        %v2632 = vsel %vm772, %v2567, 0
        %v2635 = vsel %vm772, %v2568, 0
        %v2638 = vsel %vm772, %v2569, 0
        %v2641 = vsel %vm772, %v2570, 0
        %v2644 = vsel %vm772, %v2571, 0
        %v2647 = vsel %vm772, %v2572, 0
        %v2650 = vsel %vm772, %v2573, 0
        %v2653 = vsel %vm772, %v2574, 0
        %v2656 = vsel %vm772, %v2575, 0
        %v2659 = vsel %vm772, %v2576, 0
        %v2662 = vsel %vm772, %v2577, 0
        %v2665 = vsel %vm772, %v2578, 0
        %v2668 = vsel %vm772, %v2579, 0
        %v2671 = vsel %vm772, %v2580, 0
        %v2674 = vsel %vm772, %v2581, 0
        %v2677 = vsel %vm772, %v2582, 0
        %v2680 = vsel %vm772, %v2583, 0
        %v2683 = vsel %vm772, %v2584, 0
        %v2686 = vsel %vm772, %v2585, 0
        %v2689 = vsel %vm772, %v2586, 0
        %vm2691 = vcmask 1041408
        %v2693 = vsel %vm2691, %v2587, 0
        %2695 = vmatprep.subr.mxu0 0.0
        %2696 = vmatpush1.msra.mxu0 %v2693
        %2697 = vmatprep.subr.mxu0 0.0
        %2698 = vmatpush1.msra.mxu0 0.0
        %2699 = vmatprep.subr.mxu0 0.0
        %2700 = vmatpush1.msra.mxu0 0.0
        %2701 = vmatprep.subr.mxu0 0.0
        %2702 = vmatpush1.msra.mxu0 0.0
        %2703 = vmatprep.subr.mxu0 0.0
        %2704 = vmatpush1.msra.mxu0 0.0
        %2705 = vmatprep.subr.mxu0 0.0
        %2706 = vmatpush1.msra.mxu0 0.0
        %2707 = vmatprep.subr.mxu0 0.0
        %2708 = vmatpush1.msra.mxu0 0.0
        %2709 = vmatprep.subr.mxu0 0.0
        %2710 = vmatpush1.msra.mxu0 0.0
        %2711 = vmatprep.subr.mxu0 0.0
        %2712 = vmatpush1.msra.mxu0 0.0
        %2713 = vmatprep.subr.mxu0 0.0
        %2714 = vmatpush1.msra.mxu0 0.0
        %2715 = vmatprep.subr.mxu0 0.0
        %2716 = vmatpush1.msra.mxu0 0.0
        %2717 = vmatprep.subr.mxu0 0.0
        %2718 = vmatpush1.msra.mxu0 0.0
        %2719 = vmatprep.subr.mxu0 0.0
        %2720 = vmatpush1.msra.mxu0 0.0
        %2721 = vmatprep.subr.mxu0 0.0
        %2722 = vmatpush1.msra.mxu0 0.0
        %2723 = vmatprep.subr.mxu0 0.0
        %2724 = vmatpush1.msra.mxu0 0.0
        %2725 = vmatprep.subr.mxu0 0.0
        %2726 = vmatpush1.msra.mxu0 0.0
        %2727 = vmatprep.subr.mxu0 0.0
        %2728 = vmatpush1.msra.mxu0 0.0
        %2729 = vmatprep.subr.mxu0 0.0
        %2730 = vmatpush1.msra.mxu0 0.0
        %2731 = vmatprep.subr.mxu0 0.0
        %2732 = vmatpush1.msra.mxu0 0.0
        %2733 = vmatprep.subr.mxu0 0.0
        %2734 = vmatpush1.msra.mxu0 0.0
        %2735 = vmatprep.subr.mxu0 0.0
        %2736 = vmatpush1.msra.mxu0 0.0
        %2737 = vmatprep.subr.mxu0 0.0
        %2738 = vmatpush1.msra.mxu0 0.0
        %2739 = vmatprep.subr.mxu0 0.0
        %2740 = vmatpush1.msra.mxu0 0.0
        %2741 = vmatprep.subr.mxu0 0.0
        %2742 = vmatpush1.msra.mxu0 0.0
        %2743 = vmatprep.subr.mxu0 0.0
        %2744 = vmatpush1.msra.mxu0 0.0
        %2745 = vmatprep.subr.mxu0 0.0
        %2746 = vmatpush1.msra.mxu0 0.0
        %2747 = vmatprep.subr.mxu0 0.0
        %2748 = vmatpush1.msra.mxu0 0.0
        %2749 = vmatprep.subr.mxu0 0.0
        %2750 = vmatpush1.msra.mxu0 0.0
        %2751 = vmatprep.subr.mxu0 0.0
        %2752 = vmatpush1.msra.mxu0 0.0
        %2753 = vmatprep.subr.mxu0 0.0
        %2754 = vmatpush1.msra.mxu0 0.0
        %2755 = vmatprep.subr.mxu0 0.0
        %2756 = vmatpush1.msra.mxu0 0.0
        %2757 = vmatprep.subr.mxu0 0.0
        %2758 = vmatpush1.msra.mxu0 0.0
        %2759 = vmatprep.mubr.f32.mxu0 0.0
        %2760 = vmatmul.mubr.f32.gmra.mrb[0].mxu0 %v2596
        %v2761 = vpop.f32.mrb[0].mxu0
        %v2762 = vadd.f32 %v2593, %v2761
        %v2763 = vpop.f32.mrb[0].mxu0
        %2764 = vmatprep.mubr.f32.mxu0 0.0
        %2765 = vmatmul.mubr.f32.gmra.mrb[0].mxu0 %v2599
        %v2766 = vpop.f32.mrb[0].mxu0
        %v2767 = vadd.f32 %v2593, %v2766
        %v2768 = vpop.f32.mrb[0].mxu0
        %2769 = vmatprep.mubr.f32.mxu0 0.0
        %2770 = vmatmul.mubr.f32.gmra.mrb[0].mxu0 %v2602
        %v2771 = vpop.f32.mrb[0].mxu0
        %v2772 = vadd.f32 %v2593, %v2771
        %v2773 = vpop.f32.mrb[0].mxu0
        %2774 = vmatprep.mubr.f32.mxu0 0.0
        %2775 = vmatmul.mubr.f32.gmra.mrb[0].mxu0 %v2605
        %v2776 = vpop.f32.mrb[0].mxu0
        %v2777 = vadd.f32 %v2593, %v2776
        %v2778 = vpop.f32.mrb[0].mxu0
        %2779 = vmatprep.mubr.f32.mxu0 0.0
        %2780 = vmatmul.mubr.f32.gmra.mrb[0].mxu0 %v2608
        %v2781 = vpop.f32.mrb[0].mxu0
        %v2782 = vadd.f32 %v2593, %v2781
        %v2783 = vpop.f32.mrb[0].mxu0
        %2784 = vmatprep.mubr.f32.mxu0 0.0
        %2785 = vmatmul.mubr.f32.gmra.mrb[0].mxu0 %v2611
        %v2786 = vpop.f32.mrb[0].mxu0
        %v2787 = vadd.f32 %v2593, %v2786
        %v2788 = vpop.f32.mrb[0].mxu0
        %2789 = vmatprep.mubr.f32.mxu0 0.0
        %2790 = vmatmul.mubr.f32.gmra.mrb[0].mxu0 %v2614
        %v2791 = vpop.f32.mrb[0].mxu0
        %v2792 = vadd.f32 %v2593, %v2791
        %v2793 = vpop.f32.mrb[0].mxu0
        %2794 = vmatprep.mubr.f32.mxu0 0.0
        %2795 = vmatmul.mubr.f32.gmra.mrb[0].mxu0 %v2617
        %v2796 = vpop.f32.mrb[0].mxu0
        %v2797 = vadd.f32 %v2593, %v2796
        %v2798 = vpop.f32.mrb[0].mxu0
        %2799 = vmatprep.mubr.f32.mxu0 0.0
        %2800 = vmatmul.mubr.f32.gmra.mrb[0].mxu0 %v2620
        %v2801 = vpop.f32.mrb[0].mxu0
        %v2802 = vadd.f32 %v2593, %v2801
        %v2803 = vpop.f32.mrb[0].mxu0
        %2804 = vmatprep.mubr.f32.mxu0 0.0
        %2805 = vmatmul.mubr.f32.gmra.mrb[0].mxu0 %v2623
        %v2806 = vpop.f32.mrb[0].mxu0
        %v2807 = vadd.f32 %v2593, %v2806
        %v2808 = vpop.f32.mrb[0].mxu0
        %2809 = vmatprep.mubr.f32.mxu0 0.0
        %2810 = vmatmul.mubr.f32.gmra.mrb[0].mxu0 %v2626
        %v2811 = vpop.f32.mrb[0].mxu0
        %v2812 = vadd.f32 %v2593, %v2811
        %v2813 = vpop.f32.mrb[0].mxu0
        %2814 = vmatprep.mubr.f32.mxu0 0.0
        %2815 = vmatmul.mubr.f32.gmra.mrb[0].mxu0 %v2629
        %v2816 = vpop.f32.mrb[0].mxu0
        %v2817 = vadd.f32 %v2593, %v2816
        %v2818 = vpop.f32.mrb[0].mxu0
        %2819 = vmatprep.mubr.f32.mxu0 0.0
        %2820 = vmatmul.mubr.f32.gmra.mrb[0].mxu0 %v2632
        %v2821 = vpop.f32.mrb[0].mxu0
        %v2822 = vadd.f32 %v2593, %v2821
        %v2823 = vpop.f32.mrb[0].mxu0
        %2824 = vmatprep.mubr.f32.mxu0 0.0
        %2825 = vmatmul.mubr.f32.gmra.mrb[0].mxu0 %v2635
        %v2826 = vpop.f32.mrb[0].mxu0
        %v2827 = vadd.f32 %v2593, %v2826
        %v2828 = vpop.f32.mrb[0].mxu0
        %2829 = vmatprep.mubr.f32.mxu0 0.0
        %2830 = vmatmul.mubr.f32.gmra.mrb[0].mxu0 %v2638
        %v2831 = vpop.f32.mrb[0].mxu0
        %v2832 = vadd.f32 %v2593, %v2831
        %v2833 = vpop.f32.mrb[0].mxu0
        %2834 = vmatprep.mubr.f32.mxu0 0.0
        %2835 = vmatmul.mubr.f32.gmra.mrb[0].mxu0 %v2641
        %v2836 = vpop.f32.mrb[0].mxu0
        %v2837 = vadd.f32 %v2593, %v2836
        %v2838 = vpop.f32.mrb[0].mxu0
        %2839 = vmatprep.mubr.f32.mxu0 0.0
        %2840 = vmatmul.mubr.f32.gmra.mrb[0].mxu0 %v2644
        %v2841 = vpop.f32.mrb[0].mxu0
        %v2842 = vadd.f32 %v2593, %v2841
        %v2843 = vpop.f32.mrb[0].mxu0
        %2844 = vmatprep.mubr.f32.mxu0 0.0
        %2845 = vmatmul.mubr.f32.gmra.mrb[0].mxu0 %v2647
        %v2846 = vpop.f32.mrb[0].mxu0
        %v2847 = vadd.f32 %v2593, %v2846
        %v2848 = vpop.f32.mrb[0].mxu0
        %2849 = vmatprep.mubr.f32.mxu0 0.0
        %2850 = vmatmul.mubr.f32.gmra.mrb[0].mxu0 %v2650
        %v2851 = vpop.f32.mrb[0].mxu0
        %v2852 = vadd.f32 %v2593, %v2851
        %v2853 = vpop.f32.mrb[0].mxu0
        %2854 = vmatprep.mubr.f32.mxu0 0.0
        %2855 = vmatmul.mubr.f32.gmra.mrb[0].mxu0 %v2653
        %v2856 = vpop.f32.mrb[0].mxu0
        %v2857 = vadd.f32 %v2593, %v2856
        %v2858 = vpop.f32.mrb[0].mxu0
        %2859 = vmatprep.mubr.f32.mxu0 0.0
        %2860 = vmatmul.mubr.f32.gmra.mrb[0].mxu0 %v2656
        %v2861 = vpop.f32.mrb[0].mxu0
        %v2862 = vadd.f32 %v2593, %v2861
        %v2863 = vpop.f32.mrb[0].mxu0
        %2864 = vmatprep.mubr.f32.mxu0 0.0
        %2865 = vmatmul.mubr.f32.gmra.mrb[0].mxu0 %v2659
        %v2866 = vpop.f32.mrb[0].mxu0
        %v2867 = vadd.f32 %v2593, %v2866
        %v2868 = vpop.f32.mrb[0].mxu0
        %2869 = vmatprep.mubr.f32.mxu0 0.0
        %2870 = vmatmul.mubr.f32.gmra.mrb[0].mxu0 %v2662
        %v2871 = vpop.f32.mrb[0].mxu0
        %v2872 = vadd.f32 %v2593, %v2871
        %v2873 = vpop.f32.mrb[0].mxu0
        %2874 = vmatprep.mubr.f32.mxu0 0.0
        %2875 = vmatmul.mubr.f32.gmra.mrb[0].mxu0 %v2665
        %v2876 = vpop.f32.mrb[0].mxu0
        %v2877 = vadd.f32 %v2593, %v2876
        %v2878 = vpop.f32.mrb[0].mxu0
        %2879 = vmatprep.mubr.f32.mxu0 0.0
        %2880 = vmatmul.mubr.f32.gmra.mrb[0].mxu0 %v2668
        %v2881 = vpop.f32.mrb[0].mxu0
        %v2882 = vadd.f32 %v2593, %v2881
        %v2883 = vpop.f32.mrb[0].mxu0
        %2884 = vmatprep.mubr.f32.mxu0 0.0
        %2885 = vmatmul.mubr.f32.gmra.mrb[0].mxu0 %v2671
        %v2886 = vpop.f32.mrb[0].mxu0
        %v2887 = vadd.f32 %v2593, %v2886
        %v2888 = vpop.f32.mrb[0].mxu0
        %2889 = vmatprep.mubr.f32.mxu0 0.0
        %2890 = vmatmul.mubr.f32.gmra.mrb[0].mxu0 %v2674
        %v2891 = vpop.f32.mrb[0].mxu0
        %v2892 = vadd.f32 %v2593, %v2891
        %v2893 = vpop.f32.mrb[0].mxu0
        %2894 = vmatprep.mubr.f32.mxu0 0.0
        %2895 = vmatmul.mubr.f32.gmra.mrb[0].mxu0 %v2677
        %v2896 = vpop.f32.mrb[0].mxu0
        %v2897 = vadd.f32 %v2593, %v2896
        %v2898 = vpop.f32.mrb[0].mxu0
        %2899 = vmatprep.mubr.f32.mxu0 0.0
        %2900 = vmatmul.mubr.f32.gmra.mrb[0].mxu0 %v2680
        %v2901 = vpop.f32.mrb[0].mxu0
        %v2902 = vadd.f32 %v2593, %v2901
        %v2903 = vpop.f32.mrb[0].mxu0
        %2904 = vmatprep.mubr.f32.mxu0 0.0
        %2905 = vmatmul.mubr.f32.gmra.mrb[0].mxu0 %v2683
        %v2906 = vpop.f32.mrb[0].mxu0
        %v2907 = vadd.f32 %v2593, %v2906
        %v2908 = vpop.f32.mrb[0].mxu0
        %2909 = vmatprep.mubr.f32.mxu0 0.0
        %2910 = vmatmul.mubr.f32.gmra.mrb[0].mxu0 %v2686
        %v2911 = vpop.f32.mrb[0].mxu0
        %v2912 = vadd.f32 %v2593, %v2911
        %v2913 = vpop.f32.mrb[0].mxu0
        %2914 = vmatprep.mubr.f32.mxu0 0.0
        %2915 = vmatmul.mubr.f32.gmra.mrb[0].mxu0 %v2689
        %v2916 = vpop.f32.mrb[0].mxu0
        %v2917 = vadd.f32 %v2593, %v2916
        %v2918 = vpop.f32.mrb[0].mxu0
        %2919 = vdwg.mxu0
        %v2920 = vmax.f32 %v2762, 0.0
        %v2921 = vmax.f32 %v2767, 0.0
        %v2922 = vmax.f32 %v2772, 0.0
        %v2923 = vmax.f32 %v2777, 0.0
        %v2924 = vmax.f32 %v2782, 0.0
        %v2925 = vmax.f32 %v2787, 0.0
        %v2926 = vmax.f32 %v2792, 0.0
        %v2927 = vmax.f32 %v2797, 0.0
        %v2928 = vmax.f32 %v2802, 0.0
        %v2929 = vmax.f32 %v2807, 0.0
        %v2930 = vmax.f32 %v2812, 0.0
        %v2931 = vmax.f32 %v2817, 0.0
        %v2932 = vmax.f32 %v2822, 0.0
        %v2933 = vmax.f32 %v2827, 0.0
        %v2934 = vmax.f32 %v2832, 0.0
        %v2935 = vmax.f32 %v2837, 0.0
        %v2936 = vmax.f32 %v2842, 0.0
        %v2937 = vmax.f32 %v2847, 0.0
        %v2938 = vmax.f32 %v2852, 0.0
        %v2939 = vmax.f32 %v2857, 0.0
        %v2940 = vmax.f32 %v2862, 0.0
        %v2941 = vmax.f32 %v2867, 0.0
        %v2942 = vmax.f32 %v2872, 0.0
        %v2943 = vmax.f32 %v2877, 0.0
        %v2944 = vmax.f32 %v2882, 0.0
        %v2945 = vmax.f32 %v2887, 0.0
        %v2946 = vmax.f32 %v2892, 0.0
        %v2947 = vmax.f32 %v2897, 0.0
        %v2948 = vmax.f32 %v2902, 0.0
        %v2949 = vmax.f32 %v2907, 0.0
        %v2950 = vmax.f32 %v2912, 0.0
        %v2951 = vmax.f32 %v2917, 0.0
        %v2952 = vld [vmem:[#allocation12] sm:$0xf]
        %v2954 = vsel %vm511, %v2952, 0
        %2956 = vmatprep.subr.mxu0 0.0
        %2957 = vmatpush1.msra.mxu0 %v2954
        %2958 = vmatprep.subr.mxu0 0.0
        %2959 = vmatpush1.msra.mxu0 0.0
        %2960 = vmatprep.subr.mxu0 0.0
        %2961 = vmatpush1.msra.mxu0 0.0
        %2962 = vmatprep.subr.mxu0 0.0
        %2963 = vmatpush1.msra.mxu0 0.0
        %2964 = vmatprep.subr.mxu0 0.0
        %2965 = vmatpush1.msra.mxu0 0.0
        %2966 = vmatprep.subr.mxu0 0.0
        %2967 = vmatpush1.msra.mxu0 0.0
        %2968 = vmatprep.subr.mxu0 0.0
        %2969 = vmatpush1.msra.mxu0 0.0
        %2970 = vmatprep.subr.mxu0 0.0
        %2971 = vmatpush1.msra.mxu0 0.0
        %2972 = vmatprep.subr.mxu0 0.0
        %2973 = vmatpush1.msra.mxu0 0.0
        %2974 = vmatprep.subr.mxu0 0.0
        %2975 = vmatpush1.msra.mxu0 0.0
        %2976 = vmatprep.subr.mxu0 0.0
        %2977 = vmatpush1.msra.mxu0 0.0
        %2978 = vmatprep.subr.mxu0 0.0
        %2979 = vmatpush1.msra.mxu0 0.0
        %2980 = vmatprep.subr.mxu0 0.0
        %2981 = vmatpush1.msra.mxu0 0.0
        %2982 = vmatprep.subr.mxu0 0.0
        %2983 = vmatpush1.msra.mxu0 0.0
        %2984 = vmatprep.subr.mxu0 0.0
        %2985 = vmatpush1.msra.mxu0 0.0
        %2986 = vmatprep.subr.mxu0 0.0
        %2987 = vmatpush1.msra.mxu0 0.0
        %2988 = vmatprep.subr.mxu0 0.0
        %2989 = vmatpush1.msra.mxu0 0.0
        %2990 = vmatprep.subr.mxu0 0.0
        %2991 = vmatpush1.msra.mxu0 0.0
        %2992 = vmatprep.subr.mxu0 0.0
        %2993 = vmatpush1.msra.mxu0 0.0
        %2994 = vmatprep.subr.mxu0 0.0
        %2995 = vmatpush1.msra.mxu0 0.0
        %2996 = vmatprep.subr.mxu0 0.0
        %2997 = vmatpush1.msra.mxu0 0.0
        %2998 = vmatprep.subr.mxu0 0.0
        %2999 = vmatpush1.msra.mxu0 0.0
        %3000 = vmatprep.subr.mxu0 0.0
        %3001 = vmatpush1.msra.mxu0 0.0
        %3002 = vmatprep.subr.mxu0 0.0
        %3003 = vmatpush1.msra.mxu0 0.0
        %3004 = vmatprep.subr.mxu0 0.0
        %3005 = vmatpush1.msra.mxu0 0.0
        %3006 = vmatprep.subr.mxu0 0.0
        %3007 = vmatpush1.msra.mxu0 0.0
        %3008 = vmatprep.subr.mxu0 0.0
        %3009 = vmatpush1.msra.mxu0 0.0
        %3010 = vmatprep.subr.mxu0 0.0
        %3011 = vmatpush1.msra.mxu0 0.0
        %3012 = vmatprep.subr.mxu0 0.0
        %3013 = vmatpush1.msra.mxu0 0.0
        %3014 = vmatprep.subr.mxu0 0.0
        %3015 = vmatpush1.msra.mxu0 0.0
        %3016 = vmatprep.subr.mxu0 0.0
        %3017 = vmatpush1.msra.mxu0 0.0
        %3018 = vmatprep.subr.mxu0 0.0
        %3019 = vmatpush1.msra.mxu0 0.0
        %3020 = vmatprep.mubr.f32.mxu0 0.0
        %3021 = vmatmul.mubr.f32.gmra.mrb[0].mxu0 %v416
        %v3022 = vpop.f32.mrb[0].mxu0
        %v3023 = vadd.f32 %v2920, %v3022
        %v3024 = vpop.f32.mrb[0].mxu0
        %3025 = vmatprep.mubr.f32.mxu0 0.0
        %3026 = vmatmul.mubr.f32.gmra.mrb[0].mxu0 %v419
        %v3027 = vpop.f32.mrb[0].mxu0
        %v3028 = vadd.f32 %v2921, %v3027
        %v3029 = vpop.f32.mrb[0].mxu0
        %3030 = vmatprep.mubr.f32.mxu0 0.0
        %3031 = vmatmul.mubr.f32.gmra.mrb[0].mxu0 %v422
        %v3032 = vpop.f32.mrb[0].mxu0
        %v3033 = vadd.f32 %v2922, %v3032
        %v3034 = vpop.f32.mrb[0].mxu0
        %3035 = vmatprep.mubr.f32.mxu0 0.0
        %3036 = vmatmul.mubr.f32.gmra.mrb[0].mxu0 %v425
        %v3037 = vpop.f32.mrb[0].mxu0
        %v3038 = vadd.f32 %v2923, %v3037
        %v3039 = vpop.f32.mrb[0].mxu0
        %3040 = vmatprep.mubr.f32.mxu0 0.0
        %3041 = vmatmul.mubr.f32.gmra.mrb[0].mxu0 %v428
        %v3042 = vpop.f32.mrb[0].mxu0
        %v3043 = vadd.f32 %v2924, %v3042
        %v3044 = vpop.f32.mrb[0].mxu0
        %3045 = vmatprep.mubr.f32.mxu0 0.0
        %3046 = vmatmul.mubr.f32.gmra.mrb[0].mxu0 %v431
        %v3047 = vpop.f32.mrb[0].mxu0
        %v3048 = vadd.f32 %v2925, %v3047
        %v3049 = vpop.f32.mrb[0].mxu0
        %3050 = vmatprep.mubr.f32.mxu0 0.0
        %3051 = vmatmul.mubr.f32.gmra.mrb[0].mxu0 %v434
        %v3052 = vpop.f32.mrb[0].mxu0
        %v3053 = vadd.f32 %v2926, %v3052
        %v3054 = vpop.f32.mrb[0].mxu0
        %3055 = vmatprep.mubr.f32.mxu0 0.0
        %3056 = vmatmul.mubr.f32.gmra.mrb[0].mxu0 %v437
        %v3057 = vpop.f32.mrb[0].mxu0
        %v3058 = vadd.f32 %v2927, %v3057
        %v3059 = vpop.f32.mrb[0].mxu0
        %3060 = vmatprep.mubr.f32.mxu0 0.0
        %3061 = vmatmul.mubr.f32.gmra.mrb[0].mxu0 %v440
        %v3062 = vpop.f32.mrb[0].mxu0
        %v3063 = vadd.f32 %v2928, %v3062
        %v3064 = vpop.f32.mrb[0].mxu0
        %3065 = vmatprep.mubr.f32.mxu0 0.0
        %3066 = vmatmul.mubr.f32.gmra.mrb[0].mxu0 %v443
        %v3067 = vpop.f32.mrb[0].mxu0
        %v3068 = vadd.f32 %v2929, %v3067
        %v3069 = vpop.f32.mrb[0].mxu0
        %3070 = vmatprep.mubr.f32.mxu0 0.0
        %3071 = vmatmul.mubr.f32.gmra.mrb[0].mxu0 %v446
        %v3072 = vpop.f32.mrb[0].mxu0
        %v3073 = vadd.f32 %v2930, %v3072
        %v3074 = vpop.f32.mrb[0].mxu0
        %3075 = vmatprep.mubr.f32.mxu0 0.0
        %3076 = vmatmul.mubr.f32.gmra.mrb[0].mxu0 %v449
        %v3077 = vpop.f32.mrb[0].mxu0
        %v3078 = vadd.f32 %v2931, %v3077
        %v3079 = vpop.f32.mrb[0].mxu0
        %3080 = vmatprep.mubr.f32.mxu0 0.0
        %3081 = vmatmul.mubr.f32.gmra.mrb[0].mxu0 %v452
        %v3082 = vpop.f32.mrb[0].mxu0
        %v3083 = vadd.f32 %v2932, %v3082
        %v3084 = vpop.f32.mrb[0].mxu0
        %3085 = vmatprep.mubr.f32.mxu0 0.0
        %3086 = vmatmul.mubr.f32.gmra.mrb[0].mxu0 %v455
        %v3087 = vpop.f32.mrb[0].mxu0
        %v3088 = vadd.f32 %v2933, %v3087
        %v3089 = vpop.f32.mrb[0].mxu0
        %3090 = vmatprep.mubr.f32.mxu0 0.0
        %3091 = vmatmul.mubr.f32.gmra.mrb[0].mxu0 %v458
        %v3092 = vpop.f32.mrb[0].mxu0
        %v3093 = vadd.f32 %v2934, %v3092
        %v3094 = vpop.f32.mrb[0].mxu0
        %3095 = vmatprep.mubr.f32.mxu0 0.0
        %3096 = vmatmul.mubr.f32.gmra.mrb[0].mxu0 %v461
        %v3097 = vpop.f32.mrb[0].mxu0
        %v3098 = vadd.f32 %v2935, %v3097
        %v3099 = vpop.f32.mrb[0].mxu0
        %3100 = vmatprep.mubr.f32.mxu0 0.0
        %3101 = vmatmul.mubr.f32.gmra.mrb[0].mxu0 %v464
        %v3102 = vpop.f32.mrb[0].mxu0
        %v3103 = vadd.f32 %v2936, %v3102
        %v3104 = vpop.f32.mrb[0].mxu0
        %3105 = vmatprep.mubr.f32.mxu0 0.0
        %3106 = vmatmul.mubr.f32.gmra.mrb[0].mxu0 %v467
        %v3107 = vpop.f32.mrb[0].mxu0
        %v3108 = vadd.f32 %v2937, %v3107
        %v3109 = vpop.f32.mrb[0].mxu0
        %3110 = vmatprep.mubr.f32.mxu0 0.0
        %3111 = vmatmul.mubr.f32.gmra.mrb[0].mxu0 %v470
        %v3112 = vpop.f32.mrb[0].mxu0
        %v3113 = vadd.f32 %v2938, %v3112
        %v3114 = vpop.f32.mrb[0].mxu0
        %3115 = vmatprep.mubr.f32.mxu0 0.0
        %3116 = vmatmul.mubr.f32.gmra.mrb[0].mxu0 %v473
        %v3117 = vpop.f32.mrb[0].mxu0
        %v3118 = vadd.f32 %v2939, %v3117
        %v3119 = vpop.f32.mrb[0].mxu0
        %3120 = vmatprep.mubr.f32.mxu0 0.0
        %3121 = vmatmul.mubr.f32.gmra.mrb[0].mxu0 %v476
        %v3122 = vpop.f32.mrb[0].mxu0
        %v3123 = vadd.f32 %v2940, %v3122
        %v3124 = vpop.f32.mrb[0].mxu0
        %3125 = vmatprep.mubr.f32.mxu0 0.0
        %3126 = vmatmul.mubr.f32.gmra.mrb[0].mxu0 %v479
        %v3127 = vpop.f32.mrb[0].mxu0
        %v3128 = vadd.f32 %v2941, %v3127
        %v3129 = vpop.f32.mrb[0].mxu0
        %3130 = vmatprep.mubr.f32.mxu0 0.0
        %3131 = vmatmul.mubr.f32.gmra.mrb[0].mxu0 %v482
        %v3132 = vpop.f32.mrb[0].mxu0
        %v3133 = vadd.f32 %v2942, %v3132
        %v3134 = vpop.f32.mrb[0].mxu0
        %3135 = vmatprep.mubr.f32.mxu0 0.0
        %3136 = vmatmul.mubr.f32.gmra.mrb[0].mxu0 %v485
        %v3137 = vpop.f32.mrb[0].mxu0
        %v3138 = vadd.f32 %v2943, %v3137
        %v3139 = vpop.f32.mrb[0].mxu0
        %3140 = vmatprep.mubr.f32.mxu0 0.0
        %3141 = vmatmul.mubr.f32.gmra.mrb[0].mxu0 %v488
        %v3142 = vpop.f32.mrb[0].mxu0
        %v3143 = vadd.f32 %v2944, %v3142
        %v3144 = vpop.f32.mrb[0].mxu0
        %3145 = vmatprep.mubr.f32.mxu0 0.0
        %3146 = vmatmul.mubr.f32.gmra.mrb[0].mxu0 %v491
        %v3147 = vpop.f32.mrb[0].mxu0
        %v3148 = vadd.f32 %v2945, %v3147
        %v3149 = vpop.f32.mrb[0].mxu0
        %3150 = vmatprep.mubr.f32.mxu0 0.0
        %3151 = vmatmul.mubr.f32.gmra.mrb[0].mxu0 %v494
        %v3152 = vpop.f32.mrb[0].mxu0
        %v3153 = vadd.f32 %v2946, %v3152
        %v3154 = vpop.f32.mrb[0].mxu0
        %3155 = vmatprep.mubr.f32.mxu0 0.0
        %3156 = vmatmul.mubr.f32.gmra.mrb[0].mxu0 %v497
        %v3157 = vpop.f32.mrb[0].mxu0
        %v3158 = vadd.f32 %v2947, %v3157
        %v3159 = vpop.f32.mrb[0].mxu0
        %3160 = vmatprep.mubr.f32.mxu0 0.0
        %3161 = vmatmul.mubr.f32.gmra.mrb[0].mxu0 %v500
        %v3162 = vpop.f32.mrb[0].mxu0
        %v3163 = vadd.f32 %v2948, %v3162
        %v3164 = vpop.f32.mrb[0].mxu0
        %3165 = vmatprep.mubr.f32.mxu0 0.0
        %3166 = vmatmul.mubr.f32.gmra.mrb[0].mxu0 %v503
        %v3167 = vpop.f32.mrb[0].mxu0
        %v3168 = vadd.f32 %v2949, %v3167
        %v3169 = vpop.f32.mrb[0].mxu0
        %3170 = vmatprep.mubr.f32.mxu0 0.0
        %3171 = vmatmul.mubr.f32.gmra.mrb[0].mxu0 %v506
        %v3172 = vpop.f32.mrb[0].mxu0
        %v3173 = vadd.f32 %v2950, %v3172
        %v3174 = vpop.f32.mrb[0].mxu0
        %3175 = vmatprep.mubr.f32.mxu0 0.0
        %3176 = vmatmul.mubr.f32.gmra.mrb[0].mxu0 %v509
        %v3177 = vpop.f32.mrb[0].mxu0
        %v3178 = vadd.f32 %v2951, %v3177
        %v3179 = vpop.f32.mrb[0].mxu0
        %3180 = vdwg.mxu0
        %3181 = vst.msk [vmem:[%s373] sm:$0xff] %vm414, %v3023
        %3182 = vst.msk [vmem:[%s373 + $0x8] sm:$0xff] %vm414, %v3028
        %3183 = vst.msk [vmem:[%s373 + $0x10] sm:$0xff] %vm414, %v3033
        %3184 = vst.msk [vmem:[%s373 + $0x18] sm:$0xff] %vm414, %v3038
        %3185 = vst.msk [vmem:[%s373 + $0x20] sm:$0xff] %vm414, %v3043
        %3186 = vst.msk [vmem:[%s373 + $0x28] sm:$0xff] %vm414, %v3048
        %3187 = vst.msk [vmem:[%s373 + $0x30] sm:$0xff] %vm414, %v3053
        %3188 = vst.msk [vmem:[%s373 + $0x38] sm:$0xff] %vm414, %v3058
        %3189 = vst.msk [vmem:[%s373 + $0x40] sm:$0xff] %vm414, %v3063
        %3190 = vst.msk [vmem:[%s373 + $0x48] sm:$0xff] %vm414, %v3068
        %3191 = vst.msk [vmem:[%s373 + $0x50] sm:$0xff] %vm414, %v3073
        %3192 = vst.msk [vmem:[%s373 + $0x58] sm:$0xff] %vm414, %v3078
        %3193 = vst.msk [vmem:[%s373 + $0x60] sm:$0xff] %vm414, %v3083
        %3194 = vst.msk [vmem:[%s373 + $0x68] sm:$0xff] %vm414, %v3088
        %3195 = vst.msk [vmem:[%s373 + $0x70] sm:$0xff] %vm414, %v3093
        %3196 = vst.msk [vmem:[%s373 + $0x78] sm:$0xff] %vm414, %v3098
        %3197 = vst.msk [vmem:[%s373 + $0x80] sm:$0xff] %vm414, %v3103
        %3198 = vst.msk [vmem:[%s373 + $0x88] sm:$0xff] %vm414, %v3108
        %3199 = vst.msk [vmem:[%s373 + $0x90] sm:$0xff] %vm414, %v3113
        %3200 = vst.msk [vmem:[%s373 + $0x98] sm:$0xff] %vm414, %v3118
        %3201 = vst.msk [vmem:[%s373 + $0xa0] sm:$0xff] %vm414, %v3123
        %3202 = vst.msk [vmem:[%s373 + $0xa8] sm:$0xff] %vm414, %v3128
        %3203 = vst.msk [vmem:[%s373 + $0xb0] sm:$0xff] %vm414, %v3133
        %3204 = vst.msk [vmem:[%s373 + $0xb8] sm:$0xff] %vm414, %v3138
        %3205 = vst.msk [vmem:[%s373 + $0xc0] sm:$0xff] %vm414, %v3143
        %3206 = vst.msk [vmem:[%s373 + $0xc8] sm:$0xff] %vm414, %v3148
        %3207 = vst.msk [vmem:[%s373 + $0xd0] sm:$0xff] %vm414, %v3153
        %3208 = vst.msk [vmem:[%s373 + $0xd8] sm:$0xff] %vm414, %v3158
        %3209 = vst.msk [vmem:[%s373 + $0xe0] sm:$0xff] %vm414, %v3163
        %3210 = vst.msk [vmem:[%s373 + $0xe8] sm:$0xff] %vm414, %v3168
        %3211 = vst.msk [vmem:[%s373 + $0xf0] sm:$0xff] %vm414, %v3173
        %3212 = vst.msk [vmem:[%s373 + $0xf8] sm:$0xff] %vm414, %v3178
        %s3213 = sand.u32 %s187, 1
        %s3214 = scalar_lea.sflag [#allocation5], %s3213
        %s3215 = sand.u32 %s187, 1
        %s3216 = smul.addr %s3215, 256
        %s3217 = scalar_lea.vmem [#allocation15], %s3216
        // Predicated region
        $region77: #{inverted_residual_pallas.1} parent=47 // pred_check
          %p3218 = pneg %p197
        $region78: #{inverted_residual_pallas.1} parent=47 // pred_check_branch
          %3220 = sbr.rel (%p3218) target = $region80
        $region79: #{inverted_residual_pallas.1} parent=47 // pred_region
          %s3222 = ssub.s32 4096, 4096
          %3223 = vsyncadd %s3214, %s3222
          %s3224 = smul.addr %s27, 32
          %s3225 = smul.addr %s3224, 128
          %s3226 = scalar_lea.hbm %s7, %s3225
          %s3227 = sshll.u32 %s3217, 4
          %s3228 = int_to_ptr.vmem [resolvable:$true] %s3227
          %3233 = dma.vmem_to_hbm [thread:$0]  %s3228, 4096, %s3226, %s3214, 128, 128, 8
        $region80: #{inverted_residual_pallas.1} parent=47 // pred_fallthru
          _
      $region48: #{inverted_residual_pallas.1} parent=5 // pred_fallthru
        _
      %p3234 = scmp.le.s32.totalorder 2, %s22
      // Predicated region
      $region81: #{inverted_residual_pallas.1} parent=5 // pred_check
        %p3235 = pneg %p3234
      $region82: #{inverted_residual_pallas.1} parent=5 // pred_check_branch
        %3237 = sbr.rel (%p3235) target = $region84
      $region83: #{inverted_residual_pallas.1} parent=5 // pred_region
        %s3238 = ssub.s32 %s22, 2
        // Predicated region
        $region85: #{inverted_residual_pallas.1} parent=83 // pred_check
          %p3239 = pneg %p203
        $region86: #{inverted_residual_pallas.1} parent=83 // pred_check_branch
          %3241 = sbr.rel (%p3239) target = $region88
        $region87: #{inverted_residual_pallas.1} parent=83 // pred_region
          %s3242 = sand.u32 %s188, 1
          %s3243 = scalar_lea.sflag [#allocation5], %s3242
          %s3244 = sand.u32 %s188, 1
          %s3245 = smul.addr %s3244, 256
          %s3246 = scalar_lea.vmem [#allocation15], %s3245
          %3247 = dma.done %s3243, 4096
        $region88: #{inverted_residual_pallas.1} parent=83 // pred_fallthru
          _
      $region84: #{inverted_residual_pallas.1} parent=5 // pred_fallthru
        _
    $region6: #{inverted_residual_pallas.1} parent=1 // loop_footer
      %s26 = sadd.s32 1, %s22
    $region7: #{inverted_residual_pallas.1} parent=1 // loop_footer_branch
      %21 = sbr.rel target = $region3
    $region8: #{inverted_residual_pallas.1} parent=1 // loop_exit
      _
    %3248 = vsyncpa [#allocation4], 1
    %s3249 = scalar_lea.sflag [#allocation4], 1
    %3250 = vsyncpa %s3249, 1
    %3251 = vsyncpa [#allocation7], 1
    %3252 = vsyncpa [#allocation10], 1
    %3253 = vsyncpa [#allocation13], 1
    %3254 = vsyncpa [#allocation5], 1
    %s3255 = scalar_lea.sflag [#allocation5], 1
    %3256 = vsyncpa %s3255, 1

</llo_original>
